<compile_context>
chip_gen: v7x
topology: tpu7x:2x2x1
jax: 0.10.0
libtpu: 0.0.40
codegen_flags: <defaults>
</compile_context>

<pallas_src>
import functools

import jax
import jax.numpy as jnp
from jax.experimental import pallas as pl
from jax.experimental.pallas import tpu as pltpu


def _round_up(n, m):
    return ((n + m - 1) // m) * m


# ---------------------------------------------------------------------------
# Pallas kernel: one (batch element, row tile) grid step.
# ---------------------------------------------------------------------------
def _model_kernel(xt_ref, wc_ref, cb_ref, w1_ref, b1_ref, w2_ref, b2_ref,
                  out_ref, feat_acc, *, tile_rows):
    t = pl.program_id(1)

    @pl.when(t == 0)
    def _init():
        feat_acc[...] = jnp.zeros_like(feat_acc)

    # ---- 3x3 SAME conv as ONE MXU matmul ------------------------------------
    # xt_ref: [tile_rows+2, LXP] bf16, one padded image row per sublane row,
    # lanes = (col, channel) flattened (zero-padded to LXP).  The three
    # row-shifted slices are concatenated along lanes (LXP is a multiple of 128,
    # so this is vreg-granular) and hit the MXU once with K = 3*LXP against the
    # width-Toeplitz conv weight (all 9 taps fused along K and N).
    xs = jnp.concatenate(
        [xt_ref[pl.ds(di, tile_rows), :] for di in range(3)], axis=1)
    conv = jnp.dot(xs, wc_ref[...], preferred_element_type=jnp.float32)

    # bias + ReLU epilogue in f32 (v5e-safe).  conv: [tile_rows, NOUTP],
    # lane l = j*D + d for valid output column j; padded lanes stay exactly 0.
    h = jnp.maximum(conv + cb_ref[...], 0.0)

    # ---- global-average-pool partial sum: sublane reduce (VPU/XLU, off MXU) --
    # The 1/(H*W) scale and the reduction over the W lane-groups are folded into
    # w1 (fc1 tiled to [W*D, hidden]) host-side.
    feat_acc[...] += jnp.sum(h, axis=0, keepdims=True)      # [1, NOUTP] f32

    # ---- decoder MLP: once per batch element, on the last row tile only ------
    @pl.when(t == pl.num_programs(1) - 1)
    def _finalize():
        z = jnp.dot(feat_acc[...].astype(jnp.bfloat16), w1_ref[...],
                    preferred_element_type=jnp.float32)
        z = jnp.maximum(z + b1_ref[...], 0.0)                # [1, HP] f32
        logits = jnp.dot(z.astype(jnp.bfloat16), w2_ref[...],
                         preferred_element_type=jnp.float32)
        out_ref[...] = (logits + b2_ref[...]).astype(out_ref.dtype)


# ---------------------------------------------------------------------------
# Wrapper: layout plumbing (lane-dense padded rows, Toeplitz conv weight) and
# the pallas_call.
# ---------------------------------------------------------------------------
def encoder_decoder_forward(x, params, *, tile_rows=None):
    """x: [B, C, H, W] float -> logits [B, num_classes] float32."""
    B, C, H, W = x.shape
    conv_w, conv_b = params['conv_w'], params['conv_b']
    fc1_w, fc1_b = params['fc1_w'], params['fc1_b']
    fc2_w, fc2_b = params['fc2_w'], params['fc2_b']

    D = conv_w.shape[0]
    hidden = fc1_w.shape[1]
    NC = fc2_w.shape[1]
    assert conv_w.shape[2] == 3 and conv_w.shape[3] == 3, \
        "representative encoder uses a 3x3 SAME conv"

    Wp = W + 2                               # padded image width
    LX = Wp * C                              # lane-dense padded-row width
    LXP = _round_up(LX, 128)                 # lane-padded (aligned) row width
    NOUT = W * D                             # conv output lanes: (col j, chan d)
    NOUTP = _round_up(NOUT, 128)
    HP = _round_up(hidden, 128)
    NCP = _round_up(NC, 128)

    # ---- generation-aware VMEM budget ----------------------------------------
    try:
        vmem_cap = int(pltpu.get_tpu_info().vmem_capacity_bytes)
    except Exception:                        # conservative (v7x per-TC) fallback
        vmem_cap = 64 * 1024 * 1024
    vmem_limit = min((vmem_cap * 3) // 4, 96 * 1024 * 1024)

    # constant inputs (weights/biases) + output + scratch, incl. x2 pipeline
    # buffering of every pallas_call operand.
    const_bytes = (2 * ((3 * LXP * NOUTP + NOUTP * HP + HP * NCP) * 2   # bf16 w
                        + (NOUTP + HP + NCP) * 4                        # f32 b
                        + NCP * 4)                                      # output
                   + NOUTP * 4)                                         # scratch
    margin = 1 << 20                                                    # slack

    # ---- row-tile selection: whole image (T=1) if it fits, else largest
    # divisor of H whose double-buffered haloed tile fits the budget.
    if tile_rows is None:
        tile_rows = 1
        for tr in range(H, 0, -1):
            if H % tr:
                continue
            if const_bytes + 2 * (tr + 2) * LXP * 2 + margin <= vmem_limit:
                tile_rows = tr
                break
    if H % tile_rows != 0:
        tile_rows = H
    T = H // tile_rows
    est = const_bytes + 2 * (tile_rows + 2) * LXP * 2 + margin
    assert est <= vmem_limit, "row tile too large for VMEM budget"

    # ---- input staging: lane-dense padded rows with 1-row halos (bf16) -------
    xh = jnp.transpose(x, (0, 2, 3, 1)).astype(jnp.float32)      # [B, H, W, C]
    xh = jnp.pad(xh, ((0, 0), (1, 1), (1, 1), (0, 0)))           # [B, H+2, Wp, C]
    xrows = xh.reshape(B, H + 2, LX)
    if LXP > LX:
        xrows = jnp.pad(xrows, ((0, 0), (0, 0), (0, LXP - LX)))
    xrows = xrows.astype(jnp.bfloat16)
    tiles = [xrows[:, t * tile_rows: t * tile_rows + tile_rows + 2, :]
             for t in range(T)]
    xt = jnp.stack(tiles, axis=1)                                # [B,T,TR+2,LXP]

    # ---- conv weights: width-Toeplitz embedding, all 9 taps fused ------------
    # wcat[di*LXP + (j+dj)*C + c, j*D + d] = conv_w[d, c, di, dj]
    taps = jnp.transpose(conv_w, (2, 3, 1, 0)).astype(jnp.float32)   # [3,3,C,D]
    jj = jnp.arange(Wp)[:, None]
    jcol = jnp.arange(W)[None, :]
    blocks = []
    for di in range(3):
        wd = jnp.zeros((LX, NOUT), jnp.float32)
        for dj in range(3):
            sel = (jj == jcol + dj).astype(jnp.float32)              # [Wp, W]
            wd = wd + jnp.kron(sel, taps[di, dj])                    # [LX, NOUT]
        blocks.append(jnp.pad(wd, ((0, LXP - LX), (0, NOUTP - NOUT))))
    wcat = jnp.concatenate(blocks, axis=0).astype(jnp.bfloat16)      # [3*LXP,NOUTP]

    # conv bias laid out per output lane (j*D + d); padded lanes stay 0 so the
    # pooling reduce never sees garbage.
    cb = jnp.tile(conv_b.astype(jnp.float32), W)
    cb = jnp.pad(cb, (0, NOUTP - NOUT)).reshape(1, NOUTP)

    # fc1 tiled over the W lane-groups with the 1/(H*W) mean folded in:
    # row j*D + d of w1 is fc1_w[d, :] / (H*W)  -> feat_wd @ w1 == mean_pool @ fc1.
    w1 = jnp.tile(fc1_w.astype(jnp.float32), (W, 1)) / float(H * W)  # [NOUT, hid]
    w1 = jnp.pad(w1, ((0, NOUTP - NOUT), (0, HP - hidden))).astype(jnp.bfloat16)
    b1 = jnp.pad(fc1_b.astype(jnp.float32), (0, HP - hidden)).reshape(1, HP)
    w2 = jnp.pad(fc2_w.astype(jnp.float32),
                 ((0, HP - hidden), (0, NCP - NC))).astype(jnp.bfloat16)
    b2 = jnp.pad(fc2_b.astype(jnp.float32), (0, NCP - NC)).reshape(1, NCP)

    kern = functools.partial(_model_kernel, tile_rows=tile_rows)

    # Constant-index operands are re-used (never re-DMA'd); their double-buffered
    # footprint is ~1 MiB here, so we keep default pipelining instead of
    # pl.Buffered(1) for robustness.
    grid_spec = pltpu.PrefetchScalarGridSpec(
        num_scalar_prefetch=0,
        grid=(B, T),
        in_specs=[
            pl.BlockSpec((None, None, tile_rows + 2, LXP),
                         lambda b, t: (b, t, 0, 0)),
            pl.BlockSpec((3 * LXP, NOUTP), lambda b, t: (0, 0)),
            pl.BlockSpec((1, NOUTP), lambda b, t: (0, 0)),
            pl.BlockSpec((NOUTP, HP), lambda b, t: (0, 0)),
            pl.BlockSpec((1, HP), lambda b, t: (0, 0)),
            pl.BlockSpec((HP, NCP), lambda b, t: (0, 0)),
            pl.BlockSpec((1, NCP), lambda b, t: (0, 0)),
        ],
        out_specs=pl.BlockSpec((None, 1, NCP), lambda b, t: (b, 0, 0)),
        scratch_shapes=[pltpu.VMEM((1, NOUTP), jnp.float32)],
    )

    out = pl.pallas_call(
        kern,
        out_shape=jax.ShapeDtypeStruct((B, 1, NCP), jnp.float32),
        grid_spec=grid_spec,
        compiler_params=pltpu.CompilerParams(
            dimension_semantics=("parallel", "arbitrary"),
            vmem_limit_bytes=int(vmem_limit),
        ),
    )(xt, wcat, cb, w1, b1, w2, b2)

    return out.reshape(B, NCP)[:, :NC]


# ---------------------------------------------------------------------------
# Pure-JAX reference (correctness check only).
# ---------------------------------------------------------------------------
def _reference(x, params):
    conv_w, conv_b = params['conv_w'], params['conv_b']
    fc1_w, fc1_b = params['fc1_w'], params['fc1_b']
    fc2_w, fc2_b = params['fc2_w'], params['fc2_b']
    y = jax.lax.conv_general_dilated(
        x, conv_w, window_strides=(1, 1), padding='SAME',
        dimension_numbers=('NCHW', 'OIHW', 'NCHW'))
    y = jax.nn.relu(y + conv_b[None, :, None, None])
    feat = jnp.mean(y, axis=(2, 3))                          # [B, D]
    z = jax.nn.relu(feat @ fc1_w + fc1_b)
    return z @ fc2_w + fc2_b


if __name__ == "__main__":
    # Small shapes consistent with the module's forward: x [B, C, H, W]
    B, C, H, W = 2, 4, 16, 16
    D, HIDDEN, NUM_CLASSES = 32, 64, 10

    key = jax.random.PRNGKey(0)
    k_x, k_cw, k_cb, k_w1, k_b1, k_w2, k_b2 = jax.random.split(key, 7)

    x = jax.random.normal(k_x, (B, C, H, W), dtype=jnp.float32)

    params = {
        'conv_w': 0.1 * jax.random.normal(k_cw, (D, C, 3, 3), jnp.float32),
        'conv_b': 0.1 * jax.random.normal(k_cb, (D,), jnp.float32),
        'fc1_w': 0.1 * jax.random.normal(k_w1, (D, HIDDEN), jnp.float32),
        'fc1_b': 0.1 * jax.random.normal(k_b1, (HIDDEN,), jnp.float32),
        'fc2_w': 0.1 * jax.random.normal(k_w2, (HIDDEN, NUM_CLASSES), jnp.float32),
        'fc2_b': 0.1 * jax.random.normal(k_b2, (NUM_CLASSES,), jnp.float32),
    }

    ref = _reference(x, params)

    # 1) Auto tile selection: at these shapes the whole image fits VMEM -> T=1,
    #    grid (B, 1) — the coarse, overhead-minimal configuration.
    fwd = jax.jit(lambda xx, pp: encoder_decoder_forward(xx, pp))
    logits = jax.block_until_ready(fwd(x, params))
    assert logits.shape == (B, NUM_CLASSES)
    # bf16 matmul operands (f32 accumulation) -> loosened tolerance vs f32 ref.
    assert jnp.allclose(logits, ref, atol=2e-2, rtol=2e-2), "mismatch (T=1)"

    # 2) Forced multi-tile path (T=2): exercises the pooled-feature accumulator
    #    and the pl.when finalize branch used for images that don't fit VMEM.
    fwd8 = jax.jit(lambda xx, pp: encoder_decoder_forward(xx, pp, tile_rows=8))
    logits8 = jax.block_until_ready(fwd8(x, params))
    assert jnp.allclose(logits8, ref, atol=2e-2, rtol=2e-2), "mismatch (T=2)"

    print("KERNEL_OK")
</pallas_src>

<mosaic_0001>
module attributes {stable_mosaic.version = 11 : i64} {
  func.func @_model_kernel(%arg0: i32, %arg1: i32, %arg2: memref<1x1x18x128xbf16, #tpu.memory_space<vmem>>, %arg3: memref<384x512xbf16, #tpu.memory_space<vmem>>, %arg4: memref<1x512xf32, #tpu.memory_space<vmem>>, %arg5: memref<512x128xbf16, #tpu.memory_space<vmem>>, %arg6: memref<1x128xf32, #tpu.memory_space<vmem>>, %arg7: memref<128x128xbf16, #tpu.memory_space<vmem>>, %arg8: memref<1x128xf32, #tpu.memory_space<vmem>>, %arg9: memref<1x1x128xf32, #tpu.memory_space<vmem>>, %arg10: memref<1x512xf32, #tpu.memory_space<vmem>>) attributes {dimension_semantics = [#tpu.dimension_semantics<parallel>, #tpu.dimension_semantics<arbitrary>], iteration_bounds = array<i64: 2, 1>, scalar_prefetch = 0 : i64, scratch_operands = 1 : i64, tpu.core_type = #tpu.core_type<tc>, window_params = [{transform_indices = @transform_0, window_bounds = array<i64: 1, 1, 18, 128>}, {pipeline_mode = #tpu.pipeline_mode<synchronous>, transform_indices = @transform_1, window_bounds = array<i64: 384, 512>}, {pipeline_mode = #tpu.pipeline_mode<synchronous>, transform_indices = @transform_2, window_bounds = array<i64: 1, 512>}, {pipeline_mode = #tpu.pipeline_mode<synchronous>, transform_indices = @transform_3, window_bounds = array<i64: 512, 128>}, {pipeline_mode = #tpu.pipeline_mode<synchronous>, transform_indices = @transform_4, window_bounds = array<i64: 1, 128>}, {pipeline_mode = #tpu.pipeline_mode<synchronous>, transform_indices = @transform_5, window_bounds = array<i64: 128, 128>}, {pipeline_mode = #tpu.pipeline_mode<synchronous>, transform_indices = @transform_6, window_bounds = array<i64: 1, 128>}, {transform_indices = @transform_7, window_bounds = array<i64: 1, 1, 128>}]} {
    %c0_i32 = arith.constant 0 : i32
    %0 = arith.cmpi eq, %arg1, %c0_i32 : i32
    %1 = arith.extui %0 : i1 to i32
    %c0_i32_0 = arith.constant 0 : i32
    %2 = arith.cmpi ne, %1, %c0_i32_0 : i32
    scf.if %2 {
      %cst_22 = arith.constant 0.000000e+00 : f32
      %25 = vector.broadcast %cst_22 : f32 to vector<1x512xf32>
      %c0_23 = arith.constant 0 : index
      %c0_24 = arith.constant 0 : index
      %26 = vector.load %arg10[%c0_23, %c0_24] : memref<1x512xf32, #tpu.memory_space<vmem>>, vector<1x512xf32>
      tpu.vector_store %arg10[%c0_23, %c0_24], %25 {strides = array<i32>} : memref<1x512xf32, #tpu.memory_space<vmem>>, vector<1x512xf32>,
    } else {
    }
    %c0 = arith.constant 0 : index
    %c0_1 = arith.constant 0 : index
    %c0_2 = arith.constant 0 : index
    %c0_3 = arith.constant 0 : index
    %3 = vector.load %arg2[%c0, %c0_1, %c0_2, %c0_3] : memref<1x1x18x128xbf16, #tpu.memory_space<vmem>>, vector<1x1x16x128xbf16>
    %4 = vector.shape_cast %3 : vector<1x1x16x128xbf16> to vector<16x128xbf16>
    %c0_4 = arith.constant 0 : index
    %c0_5 = arith.constant 0 : index
    %c1 = arith.constant 1 : index
    %c0_6 = arith.constant 0 : index
    %5 = vector.load %arg2[%c0_4, %c0_5, %c1, %c0_6] : memref<1x1x18x128xbf16, #tpu.memory_space<vmem>>, vector<1x1x16x128xbf16>
    %6 = vector.shape_cast %5 : vector<1x1x16x128xbf16> to vector<16x128xbf16>
    %c0_7 = arith.constant 0 : index
    %c0_8 = arith.constant 0 : index
    %c2 = arith.constant 2 : index
    %c0_9 = arith.constant 0 : index
    %7 = vector.load %arg2[%c0_7, %c0_8, %c2, %c0_9] : memref<1x1x18x128xbf16, #tpu.memory_space<vmem>>, vector<1x1x16x128xbf16>
    %8 = vector.shape_cast %7 : vector<1x1x16x128xbf16> to vector<16x128xbf16>
    %9 = tpu.concatenate %4, %6, %8 in 1 : vector<16x128xbf16>, vector<16x128xbf16>, vector<16x128xbf16> -> vector<16x384xbf16>
    %c0_10 = arith.constant 0 : index
    %c0_11 = arith.constant 0 : index
    %10 = vector.load %arg3[%c0_10, %c0_11] : memref<384x512xbf16, #tpu.memory_space<vmem>>, vector<384x512xbf16>
    %cst = arith.constant dense<0.000000e+00> : vector<16x512xf32>
    %11 = tpu.matmul %9, %10, %cst {dimension_numbers = #tpu.dot_dimension_numbers<[1], [0], [0], [1], [0, 0, 1, 1], [], []>} : vector<16x384xbf16>, vector<384x512xbf16>, vector<16x512xf32> -> vector<16x512xf32>
    %c0_12 = arith.constant 0 : index
    %c0_13 = arith.constant 0 : index
    %12 = vector.load %arg4[%c0_12, %c0_13] : memref<1x512xf32, #tpu.memory_space<vmem>>, vector<1x512xf32>
    %13 = vector.broadcast %12 : vector<1x512xf32> to vector<16x512xf32>
    %14 = arith.addf %11, %13 : vector<16x512xf32>
    %cst_14 = arith.constant 0.000000e+00 : f32
    %15 = vector.broadcast %cst_14 : f32 to vector<16x512xf32>
    %16 = arith.maximumf %14, %15 : vector<16x512xf32>
    %c0_15 = arith.constant 0 : index
    %c0_16 = arith.constant 0 : index
    %17 = vector.load %arg10[%c0_15, %c0_16] : memref<1x512xf32, #tpu.memory_space<vmem>>, vector<1x512xf32>
    %cst_17 = arith.constant dense<0.000000e+00> : vector<512xf32>
    %18 = vector.multi_reduction <add>, %16, %cst_17 [0] : vector<16x512xf32> to vector<512xf32>
    %19 = vector.shape_cast %18 : vector<512xf32> to vector<1x512xf32>
    %20 = arith.addf %17, %19 : vector<1x512xf32>
    %c0_18 = arith.constant 0 : index
    %c0_19 = arith.constant 0 : index
    %21 = vector.load %arg10[%c0_18, %c0_19] : memref<1x512xf32, #tpu.memory_space<vmem>>, vector<1x512xf32>
    tpu.vector_store %arg10[%c0_18, %c0_19], %20 {strides = array<i32>} : memref<1x512xf32, #tpu.memory_space<vmem>>, vector<1x512xf32>,
    %c0_i32_20 = arith.constant 0 : i32
    %22 = arith.cmpi eq, %arg1, %c0_i32_20 : i32
    %23 = arith.extui %22 : i1 to i32
    %c0_i32_21 = arith.constant 0 : i32
    %24 = arith.cmpi ne, %23, %c0_i32_21 : i32
    scf.if %24 {
      %c0_22 = arith.constant 0 : index
      %c0_23 = arith.constant 0 : index
      %25 = vector.load %arg10[%c0_22, %c0_23] : memref<1x512xf32, #tpu.memory_space<vmem>>, vector<1x512xf32>
      %26 = arith.truncf %25 : vector<1x512xf32> to vector<1x512xbf16>
      %c0_24 = arith.constant 0 : index
      %c0_25 = arith.constant 0 : index
      %27 = vector.load %arg5[%c0_24, %c0_25] : memref<512x128xbf16, #tpu.memory_space<vmem>>, vector<512x128xbf16>
      %cst_26 = arith.constant dense<0.000000e+00> : vector<1x128xf32>
      %28 = tpu.matmul %26, %27, %cst_26 {dimension_numbers = #tpu.dot_dimension_numbers<[1], [0], [0], [1], [0, 0, 1, 1], [], []>} : vector<1x512xbf16>, vector<512x128xbf16>, vector<1x128xf32> -> vector<1x128xf32>
      %c0_27 = arith.constant 0 : index
      %c0_28 = arith.constant 0 : index
      %29 = vector.load %arg6[%c0_27, %c0_28] : memref<1x128xf32, #tpu.memory_space<vmem>>, vector<1x128xf32>
      %30 = arith.addf %28, %29 : vector<1x128xf32>
      %cst_29 = arith.constant 0.000000e+00 : f32
      %31 = vector.broadcast %cst_29 : f32 to vector<1x128xf32>
      %32 = arith.maximumf %30, %31 : vector<1x128xf32>
      %33 = arith.truncf %32 : vector<1x128xf32> to vector<1x128xbf16>
      %c0_30 = arith.constant 0 : index
      %c0_31 = arith.constant 0 : index
      %34 = vector.load %arg7[%c0_30, %c0_31] : memref<128x128xbf16, #tpu.memory_space<vmem>>, vector<128x128xbf16>
      %cst_32 = arith.constant dense<0.000000e+00> : vector<1x128xf32>
      %35 = tpu.matmul %33, %34, %cst_32 {dimension_numbers = #tpu.dot_dimension_numbers<[1], [0], [0], [1], [0, 0, 1, 1], [], []>} : vector<1x128xbf16>, vector<128x128xbf16>, vector<1x128xf32> -> vector<1x128xf32>
      %c0_33 = arith.constant 0 : index
      %c0_34 = arith.constant 0 : index
      %36 = vector.load %arg8[%c0_33, %c0_34] : memref<1x128xf32, #tpu.memory_space<vmem>>, vector<1x128xf32>
      %37 = arith.addf %35, %36 : vector<1x128xf32>
      %c0_35 = arith.constant 0 : index
      %c0_36 = arith.constant 0 : index
      %c0_37 = arith.constant 0 : index
      %38 = vector.load %arg9[%c0_35, %c0_36, %c0_37] : memref<1x1x128xf32, #tpu.memory_space<vmem>>, vector<1x1x128xf32>
      %39 = vector.shape_cast %38 : vector<1x1x128xf32> to vector<1x128xf32>
      %40 = vector.shape_cast %37 : vector<1x128xf32> to vector<1x1x128xf32>
      tpu.vector_store %arg9[%c0_35, %c0_36, %c0_37], %40 {strides = array<i32>} : memref<1x1x128xf32, #tpu.memory_space<vmem>>, vector<1x1x128xf32>,
    } else {
    }
    return
  }
  func.func @transform_0(%arg0: i32, %arg1: i32) -> (i32, i32, i32, i32) {
    %c0_i32 = arith.constant 0 : i32
    %c0_i32_0 = arith.constant 0 : i32
    %c0_i32_1 = arith.constant 0 : i32
    return %arg0, %arg1, %c0_i32, %c0_i32_0 : i32, i32, i32, i32
  }
  func.func @transform_1(%arg0: i32, %arg1: i32) -> (i32, i32) {
    %c0_i32 = arith.constant 0 : i32
    %c0_i32_0 = arith.constant 0 : i32
    %c0_i32_1 = arith.constant 0 : i32
    return %c0_i32, %c0_i32_0 : i32, i32
  }
  func.func @transform_2(%arg0: i32, %arg1: i32) -> (i32, i32) {
    %c0_i32 = arith.constant 0 : i32
    %c0_i32_0 = arith.constant 0 : i32
    %c0_i32_1 = arith.constant 0 : i32
    return %c0_i32, %c0_i32_0 : i32, i32
  }
  func.func @transform_3(%arg0: i32, %arg1: i32) -> (i32, i32) {
    %c0_i32 = arith.constant 0 : i32
    %c0_i32_0 = arith.constant 0 : i32
    %c0_i32_1 = arith.constant 0 : i32
    return %c0_i32, %c0_i32_0 : i32, i32
  }
  func.func @transform_4(%arg0: i32, %arg1: i32) -> (i32, i32) {
    %c0_i32 = arith.constant 0 : i32
    %c0_i32_0 = arith.constant 0 : i32
    %c0_i32_1 = arith.constant 0 : i32
    return %c0_i32, %c0_i32_0 : i32, i32
  }
  func.func @transform_5(%arg0: i32, %arg1: i32) -> (i32, i32) {
    %c0_i32 = arith.constant 0 : i32
    %c0_i32_0 = arith.constant 0 : i32
    %c0_i32_1 = arith.constant 0 : i32
    return %c0_i32, %c0_i32_0 : i32, i32
  }
  func.func @transform_6(%arg0: i32, %arg1: i32) -> (i32, i32) {
    %c0_i32 = arith.constant 0 : i32
    %c0_i32_0 = arith.constant 0 : i32
    %c0_i32_1 = arith.constant 0 : i32
    return %c0_i32, %c0_i32_0 : i32, i32
  }
  func.func @transform_7(%arg0: i32, %arg1: i32) -> (i32, i32, i32) {
    %c0_i32 = arith.constant 0 : i32
    %c0_i32_0 = arith.constant 0 : i32
    %c0_i32_1 = arith.constant 0 : i32
    return %arg0, %c0_i32, %c0_i32_0 : i32, i32, i32
  }
}

</mosaic_0001>

<llo_original>
// kernel: tile.13
$region0: #{tile.13}
  #allocation0 [shape = 's32[1]{0}', space=sflag, size = 0x4, scoped, tag = 'scoped memory for tile.13']
  %s0 = inlined_call_operand.vmem [shape: f32[32], index: 0, kind: input, shape index: {}]
  %s1 = inlined_call_operand.vmem [shape: f32[16,32], index: 1, kind: output, shape index: {}]
  // Predicated region
  $region2: #{tile.13} parent=0 // pred_check
    _
  $region3: #{tile.13} parent=0 // pred_check_branch
    %3 = sbr.rel (0) target = $region5
  $region4: #{tile.13} parent=0 // pred_region
    _
  $region5: #{tile.13} parent=0 // pred_fallthru
    _
  %v4 = vld [vmem:[%s0] ss:$0 sm:$0xff]
  %5 = vst [vmem:[%s1] sm:$0xff] %v4
  %s6 = scalar_lea.vmem %s1, 8
  %7 = vst [vmem:[%s6] sm:$0xff] %v4

// kernel: _lambda_.1
$region0: #{_lambda_.1}
  #allocation0 [shape = 'u32[]', space=smem, size = 0x4, offset = 0x4, fixed_abs, tag = 'smem constant byte address 0x4 - core index']
  #allocation1 [shape = 'u32[144,128]{1,0:T(1,128)}', space=vmem, size = 0x12000, scoped, tag = 'internal scratch']
  #allocation2 [shape = 'f32[1,512]{1,0:T(1,128)}', space=vmem, size = 0x800, scoped, tag = 'scratch operand']
  %s0 = inlined_call_operand.vmem [shape: bf16[2,1,18,128], index: 0, kind: input, shape index: {}]
  %s1 = inlined_call_operand.vmem [shape: bf16[384,512], index: 1, kind: input, shape index: {}]
  %s2 = inlined_call_operand.vmem [shape: f32[1,512], index: 2, kind: input, shape index: {}]
  %s3 = inlined_call_operand.vmem [shape: bf16[512,128], index: 3, kind: input, shape index: {}]
  %s4 = inlined_call_operand.vmem [shape: f32[1,128], index: 4, kind: input, shape index: {}]
  %s5 = inlined_call_operand.vmem [shape: bf16[128,128], index: 5, kind: input, shape index: {}]
  %s6 = inlined_call_operand.vmem [shape: f32[1,128], index: 6, kind: input, shape index: {}]
  %s7 = inlined_call_operand.hbm [shape: f32[2,1,128], index: 7, kind: output, shape index: {}]
  %s8 = sld [smem:[#allocation0]]
  $region69: #{_lambda_.1} parent=0
    _
  %s10 = ssub.s32 1, %s8
  %s11 = scalar_select 0, %s10, %s8
  $region1: #{_lambda_.1} parent=0
    #allocation3 [shape = 'u8[1024]{0}', space=vmem, size = 0x400, scoped, tag = 'output window, operand 0']
    #allocation4 [shape = 's32[2]{0}', space=sflag, size = 0x8, scoped, tag = 'scoped memory for _lambda_.1']
    %12 = vsyncpa [#allocation4], 0
    %s13 = scalar_lea.sflag [#allocation4], 1
    %14 = vsyncpa %s13, 0
    loop: start=0, step=1, limit=4
    $region2: #{_lambda_.1} parent=1 // loop_pre_header
      _
    $region3: #{_lambda_.1} parent=1 // loop_header
      %s16 = sphi 0, %s20
      %p17 = scmp.ge.s32.totalorder %s16, 4
      %s23 = sphi 0, %s35
      %s24 = sphi 0, %s31
      %s25 = sphi 0, %s23
      %s26 = sphi 0, %s24
      %s27 = sphi 0, %s25
      %s28 = sphi 0, %s26
      %s40 = sphi 0, %s42
      %s43 = sphi 0, %s40
      %s44 = sphi 0, %s43
      %s60 = sphi 0, %s44
      %s64 = sphi 0, %s64
      %s66 = sphi 0, %s64
      %s67 = sphi 0, %s66
      %s81 = sphi 0, %s67
      %s85 = sphi 0, %s85
      %s87 = sphi 0, %s85
      %s88 = sphi 0, %s87
      %s102 = sphi 0, %s88
      %s106 = sphi 0, %s106
      %s108 = sphi 0, %s106
      %s109 = sphi 0, %s108
      %s123 = sphi 0, %s109
      %s127 = sphi 0, %s127
      %s129 = sphi 0, %s127
      %s130 = sphi 0, %s129
      %s144 = sphi 0, %s130
      %s148 = sphi 0, %s148
      %s150 = sphi 0, %s148
      %s151 = sphi 0, %s150
      %s165 = sphi 0, %s151
      %s169 = sphi 0, %s169
      %s171 = sphi 0, %s169
      %s172 = sphi 0, %s171
      %s186 = sphi 0, %s172
      %s192 = sphi 0, %s194
      %s195 = sphi 0, %s192
      %s196 = sphi 0, %s195
      %s212 = sphi 0, %s196
    $region4: #{_lambda_.1} parent=1 // loop_header_branch
      %19 = sbr.rel (%p17) target = $region8
    $region5: #{_lambda_.1} parent=1 // loop_body
      %s21 = ssub.s32 %s16, 1
      %s22 = ssub.s32 %s16, 2
      %s29 = sadd.s32 1, %s24
      %p30 = scmp.ge.s32.totalorder %s29, 1
      %s31 = scalar_select %p30, 0, %s29
      %s32 = sadd.s32 1, %s23
      %s33 = scalar_select %p30, %s32, %s23
      %p34 = scmp.ge.s32.totalorder %s33, 2
      %s35 = scalar_select %p34, 0, %s33
      %s36 = ssub.s32 %s23, %s35
      %s37 = ssub.s32 %s24, %s31
      %s38 = sor.u32 %s36, %s37
      %p39 = scmp.eq.s32.totalorder %s38, 0
      %s41 = sadd.s32 %s40, 1
      %s42 = scalar_select %p39, %s40, %s41
      %p45 = pneg %p39
      %p46 = scmp.eq.s32.totalorder %s16, 1
      %p47 = por %p45, %p46
      %p48 = scmp.ne.s32.totalorder %s40, %s43
      %p49 = scmp.eq.s32.totalorder %s16, 0
      %p50 = por %p48, %p49
      %p51 = scmp.ne.s32.totalorder %s40, %s43
      %p52 = scmp.eq.s32.totalorder %s21, 1
      %p53 = por %p51, %p52
      %p54 = scmp.ne.s32.totalorder %s43, %s44
      %p55 = scmp.eq.s32.totalorder %s21, 0
      %p56 = por %p54, %p55
      %p57 = scmp.ne.s32.totalorder %s43, %s44
      %p58 = scmp.eq.s32.totalorder %s22, 1
      %p59 = por %p57, %p58
      %p61 = scmp.ne.s32.totalorder %s44, %s60
      %p62 = scmp.eq.s32.totalorder %s22, 0
      %p63 = por %p61, %p62
      %s65 = sadd.s32 %s64, 1
      %p68 = scmp.eq.s32.totalorder %s16, 1
      %p69 = scmp.ne.s32.totalorder %s64, %s66
      %p70 = scmp.eq.s32.totalorder %s16, 0
      %p71 = por %p69, %p70
      %p72 = scmp.ne.s32.totalorder %s64, %s66
      %p73 = scmp.eq.s32.totalorder %s21, 1
      %p74 = por %p72, %p73
      %p75 = scmp.ne.s32.totalorder %s66, %s67
      %p76 = scmp.eq.s32.totalorder %s21, 0
      %p77 = por %p75, %p76
      %p78 = scmp.ne.s32.totalorder %s66, %s67
      %p79 = scmp.eq.s32.totalorder %s22, 1
      %p80 = por %p78, %p79
      %p82 = scmp.ne.s32.totalorder %s67, %s81
      %p83 = scmp.eq.s32.totalorder %s22, 0
      %p84 = por %p82, %p83
      %s86 = sadd.s32 %s85, 1
      %p89 = scmp.eq.s32.totalorder %s16, 1
      %p90 = scmp.ne.s32.totalorder %s85, %s87
      %p91 = scmp.eq.s32.totalorder %s16, 0
      %p92 = por %p90, %p91
      %p93 = scmp.ne.s32.totalorder %s85, %s87
      %p94 = scmp.eq.s32.totalorder %s21, 1
      %p95 = por %p93, %p94
      %p96 = scmp.ne.s32.totalorder %s87, %s88
      %p97 = scmp.eq.s32.totalorder %s21, 0
      %p98 = por %p96, %p97
      %p99 = scmp.ne.s32.totalorder %s87, %s88
      %p100 = scmp.eq.s32.totalorder %s22, 1
      %p101 = por %p99, %p100
      %p103 = scmp.ne.s32.totalorder %s88, %s102
      %p104 = scmp.eq.s32.totalorder %s22, 0
      %p105 = por %p103, %p104
      %s107 = sadd.s32 %s106, 1
      %p110 = scmp.eq.s32.totalorder %s16, 1
      %p111 = scmp.ne.s32.totalorder %s106, %s108
      %p112 = scmp.eq.s32.totalorder %s16, 0
      %p113 = por %p111, %p112
      %p114 = scmp.ne.s32.totalorder %s106, %s108
      %p115 = scmp.eq.s32.totalorder %s21, 1
      %p116 = por %p114, %p115
      %p117 = scmp.ne.s32.totalorder %s108, %s109
      %p118 = scmp.eq.s32.totalorder %s21, 0
      %p119 = por %p117, %p118
      %p120 = scmp.ne.s32.totalorder %s108, %s109
      %p121 = scmp.eq.s32.totalorder %s22, 1
      %p122 = por %p120, %p121
      %p124 = scmp.ne.s32.totalorder %s109, %s123
      %p125 = scmp.eq.s32.totalorder %s22, 0
      %p126 = por %p124, %p125
      %s128 = sadd.s32 %s127, 1
      %p131 = scmp.eq.s32.totalorder %s16, 1
      %p132 = scmp.ne.s32.totalorder %s127, %s129
      %p133 = scmp.eq.s32.totalorder %s16, 0
      %p134 = por %p132, %p133
      %p135 = scmp.ne.s32.totalorder %s127, %s129
      %p136 = scmp.eq.s32.totalorder %s21, 1
      %p137 = por %p135, %p136
      %p138 = scmp.ne.s32.totalorder %s129, %s130
      %p139 = scmp.eq.s32.totalorder %s21, 0
      %p140 = por %p138, %p139
      %p141 = scmp.ne.s32.totalorder %s129, %s130
      %p142 = scmp.eq.s32.totalorder %s22, 1
      %p143 = por %p141, %p142
      %p145 = scmp.ne.s32.totalorder %s130, %s144
      %p146 = scmp.eq.s32.totalorder %s22, 0
      %p147 = por %p145, %p146
      %s149 = sadd.s32 %s148, 1
      %p152 = scmp.eq.s32.totalorder %s16, 1
      %p153 = scmp.ne.s32.totalorder %s148, %s150
      %p154 = scmp.eq.s32.totalorder %s16, 0
      %p155 = por %p153, %p154
      %p156 = scmp.ne.s32.totalorder %s148, %s150
      %p157 = scmp.eq.s32.totalorder %s21, 1
      %p158 = por %p156, %p157
      %p159 = scmp.ne.s32.totalorder %s150, %s151
      %p160 = scmp.eq.s32.totalorder %s21, 0
      %p161 = por %p159, %p160
      %p162 = scmp.ne.s32.totalorder %s150, %s151
      %p163 = scmp.eq.s32.totalorder %s22, 1
      %p164 = por %p162, %p163
      %p166 = scmp.ne.s32.totalorder %s151, %s165
      %p167 = scmp.eq.s32.totalorder %s22, 0
      %p168 = por %p166, %p167
      %s170 = sadd.s32 %s169, 1
      %p173 = scmp.eq.s32.totalorder %s16, 1
      %p174 = scmp.ne.s32.totalorder %s169, %s171
      %p175 = scmp.eq.s32.totalorder %s16, 0
      %p176 = por %p174, %p175
      %p177 = scmp.ne.s32.totalorder %s169, %s171
      %p178 = scmp.eq.s32.totalorder %s21, 1
      %p179 = por %p177, %p178
      %p180 = scmp.ne.s32.totalorder %s171, %s172
      %p181 = scmp.eq.s32.totalorder %s21, 0
      %p182 = por %p180, %p181
      %p183 = scmp.ne.s32.totalorder %s171, %s172
      %p184 = scmp.eq.s32.totalorder %s22, 1
      %p185 = por %p183, %p184
      %p187 = scmp.ne.s32.totalorder %s172, %s186
      %p188 = scmp.eq.s32.totalorder %s22, 0
      %p189 = por %p187, %p188
      %s190 = ssub.s32 %s23, %s35
      %p191 = scmp.eq.s32.totalorder %s190, 0
      %s193 = sadd.s32 %s192, 1
      %s194 = scalar_select %p191, %s192, %s193
      %p197 = pneg %p191
      %p198 = scmp.eq.s32.totalorder %s16, 1
      %p199 = por %p197, %p198
      %p200 = scmp.ne.s32.totalorder %s192, %s195
      %p201 = scmp.eq.s32.totalorder %s16, 0
      %p202 = por %p200, %p201
      %p203 = scmp.ne.s32.totalorder %s192, %s195
      %p204 = scmp.eq.s32.totalorder %s21, 1
      %p205 = por %p203, %p204
      %p206 = scmp.ne.s32.totalorder %s195, %s196
      %p207 = scmp.eq.s32.totalorder %s21, 0
      %p208 = por %p206, %p207
      %p209 = scmp.ne.s32.totalorder %s195, %s196
      %p210 = scmp.eq.s32.totalorder %s22, 1
      %p211 = por %p209, %p210
      %p213 = scmp.ne.s32.totalorder %s196, %s212
      %p214 = scmp.eq.s32.totalorder %s22, 0
      %p215 = por %p213, %p214
      %p216 = scmp.le.s32.totalorder 1, %s16
      %p217 = scmp.lt.s32.totalorder %s16, 3
      %p218 = pnand %p216, %p217
      %p219 = pneg %p218
      // Predicated region
      $region9: #{_lambda_.1} parent=5 // pred_check
        _
      $region10: #{_lambda_.1} parent=5 // pred_check_branch
        %221 = sbr.rel (%p218) target = $region12
      $region11: #{_lambda_.1} parent=5 // pred_region
        %s222 = ssub.s32 %s16, 1
        // Predicated region
        $region13: #{_lambda_.1} parent=11 // pred_check
          %p223 = pneg %p77
        $region14: #{_lambda_.1} parent=11 // pred_check_branch
          %225 = sbr.rel (%p223) target = $region16
        $region15: #{_lambda_.1} parent=11 // pred_region
          _
        $region16: #{_lambda_.1} parent=11 // pred_fallthru
          _
        // Predicated region
        $region17: #{_lambda_.1} parent=11 // pred_check
          %p226 = pneg %p98
        $region18: #{_lambda_.1} parent=11 // pred_check_branch
          %228 = sbr.rel (%p226) target = $region20
        $region19: #{_lambda_.1} parent=11 // pred_region
          _
        $region20: #{_lambda_.1} parent=11 // pred_fallthru
          _
        // Predicated region
        $region21: #{_lambda_.1} parent=11 // pred_check
          %p229 = pneg %p119
        $region22: #{_lambda_.1} parent=11 // pred_check_branch
          %231 = sbr.rel (%p229) target = $region24
        $region23: #{_lambda_.1} parent=11 // pred_region
          _
        $region24: #{_lambda_.1} parent=11 // pred_fallthru
          _
        // Predicated region
        $region25: #{_lambda_.1} parent=11 // pred_check
          %p232 = pneg %p140
        $region26: #{_lambda_.1} parent=11 // pred_check_branch
          %234 = sbr.rel (%p232) target = $region28
        $region27: #{_lambda_.1} parent=11 // pred_region
          _
        $region28: #{_lambda_.1} parent=11 // pred_fallthru
          _
        // Predicated region
        $region29: #{_lambda_.1} parent=11 // pred_check
          %p235 = pneg %p161
        $region30: #{_lambda_.1} parent=11 // pred_check_branch
          %237 = sbr.rel (%p235) target = $region32
        $region31: #{_lambda_.1} parent=11 // pred_region
          _
        $region32: #{_lambda_.1} parent=11 // pred_fallthru
          _
        // Predicated region
        $region33: #{_lambda_.1} parent=11 // pred_check
          %p238 = pneg %p182
        $region34: #{_lambda_.1} parent=11 // pred_check_branch
          %240 = sbr.rel (%p238) target = $region36
        $region35: #{_lambda_.1} parent=11 // pred_region
          _
        $region36: #{_lambda_.1} parent=11 // pred_fallthru
          _
      $region12: #{_lambda_.1} parent=5 // pred_fallthru
        _
      %p241 = scmp.lt.s32.totalorder %s16, 2
      // Predicated region
      $region37: #{_lambda_.1} parent=5 // pred_check
        %p242 = pneg %p241
      $region38: #{_lambda_.1} parent=5 // pred_check_branch
        %244 = sbr.rel (%p242) target = $region40
      $region39: #{_lambda_.1} parent=5 // pred_region
        // Predicated region
        $region41: #{_lambda_.1} parent=39 // pred_check
          %p245 = pneg %p50
        $region42: #{_lambda_.1} parent=39 // pred_check_branch
          %247 = sbr.rel (%p245) target = $region44
        $region43: #{_lambda_.1} parent=39 // pred_region
          %p248 = scmp.lt.s32.totalorder %s23, 1
          %s249 = scalar_select %p248, %s23, 1
          %p250 = scmp.lt.s32.totalorder %s24, 0
          %s251 = scalar_select %p250, %s24, 0
          %s252 = smul.addr %s251, 3
          %s253 = smul.addr %s249, 3
          %s254 = sadd.s32 %s252, %s253
          %s255 = smul.addr %s254, 4
          %s256 = scalar_lea.vmem %s0, %s255
        $region44: #{_lambda_.1} parent=39 // pred_fallthru
          _
      $region40: #{_lambda_.1} parent=5 // pred_fallthru
        _
      %p257 = scmp.le.s32.totalorder 1, %s16
      %p258 = scmp.lt.s32.totalorder %s16, 3
      %p259 = pnand %p257, %p258
      %p260 = pneg %p259
      // Predicated region
      $region45: #{_lambda_.1} parent=5 // pred_check
        _
      $region46: #{_lambda_.1} parent=5 // pred_check_branch
        %262 = sbr.rel (%p259) target = $region48
      $region47: #{_lambda_.1} parent=5 // pred_region
        %s263 = ssub.s32 %s16, 1
        %p264 = scmp.lt.s32.totalorder %s25, 1
        %s265 = scalar_select %p264, %s25, 1
        %p266 = scmp.lt.s32.totalorder %s26, 0
        %s267 = scalar_select %p266, %s26, 0
        %s268 = smul.addr %s267, 3
        %s269 = smul.addr %s265, 3
        %s270 = sadd.s32 %s268, %s269
        %s271 = smul.addr %s270, 4
        %s272 = scalar_lea.vmem %s0, %s271
        %p273 = pneg %p56
        %p274 = pneg %p53
        %p275 = pneg %p77
        %p276 = pneg %p74
        %p277 = pneg %p98
        %p278 = pneg %p95
        %p279 = pneg %p119
        %p280 = pneg %p116
        %p281 = pneg %p140
        %p282 = pneg %p137
        %p283 = pneg %p161
        %p284 = pneg %p158
        %p285 = pneg %p182
        %p286 = pneg %p179
        %p287 = pneg %p208
        %p288 = pneg %p205
        %s289 = sand.u32 %s195, 1
        %s290 = scalar_lea.sflag [#allocation4], %s289
        %s291 = sand.u32 %s195, 1
        %s292 = scalar_lea.vmem [#allocation3], %s291
        %p293 = scmp.lt.s32.totalorder %s25, 1
        %s294 = scalar_select %p293, %s25, 1
        %p295 = scmp.lt.s32.totalorder %s26, 0
        %s296 = scalar_select %p295, %s26, 0
        %s297 = smul.addr %s296, 3
        %s298 = smul.addr %s294, 3
        %s299 = sadd.s32 %s297, %s298
        %s300 = smul.addr %s299, 4
        %s301 = scalar_lea.vmem %s0, %s300
        %p303 = scmp.eq.s32.totalorder %s26, 0
        // Predicated region
        $region49: #{_lambda_.1} parent=47 // pred_check
          %p304 = pneg %p303
        $region50: #{_lambda_.1} parent=47 // pred_check_branch
          %306 = sbr.rel (%p304) target = $region52
        $region51: #{_lambda_.1} parent=47 // pred_region
          %v307 = vlaneseq
          %vm308 = vcmp.ge.s32.totalorder %v307, 0
          %vm309 = vcmp.lt.s32.totalorder %v307, 512
          %vm310 = vmand %vm308, %vm309
          %311 = vst.msk [vmem:[#allocation2] sm:$0xf] %vm310, 0.0
        $region52: #{_lambda_.1} parent=47 // pred_fallthru
          _
        %v312 = vld [vmem:[%s301] sm:$0xf]
        %v313 = vld [vmem:[%s301 + $0x4] sm:$0xf]
        %v314 = vld [vmem:[%s301 + $0x8] sm:$0x1]
        %v315 = vld [vmem:[%s301] sm:$0xe]
        %v318 = vunpack.c.l.b16 %v312
        %v319 = vunpack.c.l.b16 %v313
        %v320 = vpack.c.b16 %v319, %v318
        %v323 = vunpack.c.l.b16 %v314
        %v324 = vpack.c.b16 %v323, %v323
        %vm325 = vsmask.f32 7424
        %v327 = vshrl.u32 %v320, 16
        %v329 = vshll.u32 %v320, 16
        %v331 = vrot.slane %v329, 1
        %v332 = vor.u32 %v327, %v331
        %v334 = vshll.u32 %v324, 16
        %v336 = vrot.slane %v334, 1
        %v337 = vsel %vm325, %v332, %v336
        %v340 = vunpack.c.l.b16 %v315
        %v341 = vpack.c.b16 %v319, %v340
        %vm342 = vcmask 1046528
        %v343 = vrot.slane %v341, 1
        %v344 = vrot.slane %v324, 1
        %v345 = vsel %vm342, %v343, %v344
        %v347 = vld [vmem:[%s1] sm:$0xff]
        %v348 = vld [vmem:[%s1 + $0x8] sm:$0xff]
        %v349 = vld [vmem:[%s1 + $0x10] sm:$0xff]
        %v350 = vld [vmem:[%s1 + $0x18] sm:$0xff]
        %v351 = vld [vmem:[%s1 + $0x20] sm:$0xff]
        %v352 = vld [vmem:[%s1 + $0x28] sm:$0xff]
        %v353 = vld [vmem:[%s1 + $0x30] sm:$0xff]
        %v354 = vld [vmem:[%s1 + $0x38] sm:$0xff]
        %v355 = vld [vmem:[%s1 + $0x40] sm:$0xff]
        %v356 = vld [vmem:[%s1 + $0x48] sm:$0xff]
        %v357 = vld [vmem:[%s1 + $0x50] sm:$0xff]
        %v358 = vld [vmem:[%s1 + $0x58] sm:$0xff]
        %v359 = vld [vmem:[%s1 + $0x60] sm:$0xff]
        %v360 = vld [vmem:[%s1 + $0x68] sm:$0xff]
        %v361 = vld [vmem:[%s1 + $0x70] sm:$0xff]
        %v362 = vld [vmem:[%s1 + $0x78] sm:$0xff]
        %v363 = vld [vmem:[%s1 + $0x80] sm:$0xff]
        %v364 = vld [vmem:[%s1 + $0x88] sm:$0xff]
        %v365 = vld [vmem:[%s1 + $0x90] sm:$0xff]
        %v366 = vld [vmem:[%s1 + $0x98] sm:$0xff]
        %v367 = vld [vmem:[%s1 + $0xa0] sm:$0xff]
        %v368 = vld [vmem:[%s1 + $0xa8] sm:$0xff]
        %v369 = vld [vmem:[%s1 + $0xb0] sm:$0xff]
        %v370 = vld [vmem:[%s1 + $0xb8] sm:$0xff]
        %v371 = vld [vmem:[%s1 + $0xc0] sm:$0xff]
        %v372 = vld [vmem:[%s1 + $0xc8] sm:$0xff]
        %v373 = vld [vmem:[%s1 + $0xd0] sm:$0xff]
        %v374 = vld [vmem:[%s1 + $0xd8] sm:$0xff]
        %v375 = vld [vmem:[%s1 + $0xe0] sm:$0xff]
        %v376 = vld [vmem:[%s1 + $0xe8] sm:$0xff]
        %v377 = vld [vmem:[%s1 + $0xf0] sm:$0xff]
        %v378 = vld [vmem:[%s1 + $0xf8] sm:$0xff]
        %v379 = vld [vmem:[%s1 + $0x100] sm:$0xff]
        %v380 = vld [vmem:[%s1 + $0x108] sm:$0xff]
        %v381 = vld [vmem:[%s1 + $0x110] sm:$0xff]
        %v382 = vld [vmem:[%s1 + $0x118] sm:$0xff]
        %v383 = vld [vmem:[%s1 + $0x120] sm:$0xff]
        %v384 = vld [vmem:[%s1 + $0x128] sm:$0xff]
        %v385 = vld [vmem:[%s1 + $0x130] sm:$0xff]
        %v386 = vld [vmem:[%s1 + $0x138] sm:$0xff]
        %v387 = vld [vmem:[%s1 + $0x140] sm:$0xff]
        %v388 = vld [vmem:[%s1 + $0x148] sm:$0xff]
        %v389 = vld [vmem:[%s1 + $0x150] sm:$0xff]
        %v390 = vld [vmem:[%s1 + $0x158] sm:$0xff]
        %v391 = vld [vmem:[%s1 + $0x160] sm:$0xff]
        %v392 = vld [vmem:[%s1 + $0x168] sm:$0xff]
        %v393 = vld [vmem:[%s1 + $0x170] sm:$0xff]
        %v394 = vld [vmem:[%s1 + $0x178] sm:$0xff]
        %v395 = vld [vmem:[%s1 + $0x180] sm:$0xff]
        %v396 = vld [vmem:[%s1 + $0x188] sm:$0xff]
        %v397 = vld [vmem:[%s1 + $0x190] sm:$0xff]
        %v398 = vld [vmem:[%s1 + $0x198] sm:$0xff]
        %v399 = vld [vmem:[%s1 + $0x1a0] sm:$0xff]
        %v400 = vld [vmem:[%s1 + $0x1a8] sm:$0xff]
        %v401 = vld [vmem:[%s1 + $0x1b0] sm:$0xff]
        %v402 = vld [vmem:[%s1 + $0x1b8] sm:$0xff]
        %v403 = vld [vmem:[%s1 + $0x1c0] sm:$0xff]
        %v404 = vld [vmem:[%s1 + $0x1c8] sm:$0xff]
        %v405 = vld [vmem:[%s1 + $0x1d0] sm:$0xff]
        %v406 = vld [vmem:[%s1 + $0x1d8] sm:$0xff]
        %v407 = vld [vmem:[%s1 + $0x1e0] sm:$0xff]
        %v408 = vld [vmem:[%s1 + $0x1e8] sm:$0xff]
        %v409 = vld [vmem:[%s1 + $0x1f0] sm:$0xff]
        %v410 = vld [vmem:[%s1 + $0x1f8] sm:$0xff]
        %v411 = vld [vmem:[%s1 + $0x200] sm:$0xff]
        %v412 = vld [vmem:[%s1 + $0x208] sm:$0xff]
        %v413 = vld [vmem:[%s1 + $0x210] sm:$0xff]
        %v414 = vld [vmem:[%s1 + $0x218] sm:$0xff]
        %v415 = vld [vmem:[%s1 + $0x220] sm:$0xff]
        %v416 = vld [vmem:[%s1 + $0x228] sm:$0xff]
        %v417 = vld [vmem:[%s1 + $0x230] sm:$0xff]
        %v418 = vld [vmem:[%s1 + $0x238] sm:$0xff]
        %v419 = vld [vmem:[%s1 + $0x240] sm:$0xff]
        %v420 = vld [vmem:[%s1 + $0x248] sm:$0xff]
        %v421 = vld [vmem:[%s1 + $0x250] sm:$0xff]
        %v422 = vld [vmem:[%s1 + $0x258] sm:$0xff]
        %v423 = vld [vmem:[%s1 + $0x260] sm:$0xff]
        %v424 = vld [vmem:[%s1 + $0x268] sm:$0xff]
        %v425 = vld [vmem:[%s1 + $0x270] sm:$0xff]
        %v426 = vld [vmem:[%s1 + $0x278] sm:$0xff]
        %v427 = vld [vmem:[%s1 + $0x280] sm:$0xff]
        %v428 = vld [vmem:[%s1 + $0x288] sm:$0xff]
        %v429 = vld [vmem:[%s1 + $0x290] sm:$0xff]
        %v430 = vld [vmem:[%s1 + $0x298] sm:$0xff]
        %v431 = vld [vmem:[%s1 + $0x2a0] sm:$0xff]
        %v432 = vld [vmem:[%s1 + $0x2a8] sm:$0xff]
        %v433 = vld [vmem:[%s1 + $0x2b0] sm:$0xff]
        %v434 = vld [vmem:[%s1 + $0x2b8] sm:$0xff]
        %v435 = vld [vmem:[%s1 + $0x2c0] sm:$0xff]
        %v436 = vld [vmem:[%s1 + $0x2c8] sm:$0xff]
        %v437 = vld [vmem:[%s1 + $0x2d0] sm:$0xff]
        %v438 = vld [vmem:[%s1 + $0x2d8] sm:$0xff]
        %v439 = vld [vmem:[%s1 + $0x2e0] sm:$0xff]
        %v440 = vld [vmem:[%s1 + $0x2e8] sm:$0xff]
        %v441 = vld [vmem:[%s1 + $0x2f0] sm:$0xff]
        %v442 = vld [vmem:[%s1 + $0x2f8] sm:$0xff]
        %v443 = vld [vmem:[%s2] sm:$0xf]
        %v445 = vlaneseq
        %v446 = vshrl.u32 %v445, 7
        %v447 = vsub.s32 0, %v446
        %v448 = vrot.slane %v443, %v447
        %v449 = vlaneseq
        %v450 = vshrl.u32 %v449, 7
        %v451 = vsub.s32 1, %v450
        %v452 = vrot.slane %v443, %v451
        %v453 = vlaneseq
        %v454 = vshrl.u32 %v453, 7
        %v455 = vsub.s32 2, %v454
        %v456 = vrot.slane %v443, %v455
        %v457 = vlaneseq
        %v458 = vshrl.u32 %v457, 7
        %v459 = vsub.s32 3, %v458
        %v460 = vrot.slane %v443, %v459
        %v561 = vunpack.c.l.b16 %v347
        %v562 = vunpack.c.h.b16 %v347
        %v563 = vunpack.c.l.b16 %v348
        %v564 = vunpack.c.h.b16 %v348
        %v565 = vunpack.c.l.b16 %v349
        %v566 = vunpack.c.h.b16 %v349
        %v567 = vunpack.c.l.b16 %v350
        %v568 = vunpack.c.h.b16 %v350
        %v569 = vunpack.c.l.b16 %v351
        %v570 = vunpack.c.h.b16 %v351
        %v571 = vunpack.c.l.b16 %v352
        %v572 = vunpack.c.h.b16 %v352
        %v573 = vunpack.c.l.b16 %v353
        %v574 = vunpack.c.h.b16 %v353
        %v575 = vunpack.c.l.b16 %v354
        %v576 = vunpack.c.h.b16 %v354
        %v577 = vunpack.c.l.b16 %v355
        %v578 = vunpack.c.h.b16 %v355
        %v579 = vunpack.c.l.b16 %v356
        %v580 = vunpack.c.h.b16 %v356
        %v581 = vunpack.c.l.b16 %v357
        %v582 = vunpack.c.h.b16 %v357
        %v583 = vunpack.c.l.b16 %v358
        %v584 = vunpack.c.h.b16 %v358
        %v585 = vunpack.c.l.b16 %v359
        %v586 = vunpack.c.h.b16 %v359
        %v587 = vunpack.c.l.b16 %v360
        %v588 = vunpack.c.h.b16 %v360
        %v589 = vunpack.c.l.b16 %v361
        %v590 = vunpack.c.h.b16 %v361
        %v591 = vunpack.c.l.b16 %v362
        %v592 = vunpack.c.h.b16 %v362
        %v593 = vunpack.c.l.b16 %v363
        %v594 = vunpack.c.h.b16 %v363
        %v595 = vunpack.c.l.b16 %v364
        %v596 = vunpack.c.h.b16 %v364
        %v597 = vunpack.c.l.b16 %v365
        %v598 = vunpack.c.h.b16 %v365
        %v599 = vunpack.c.l.b16 %v366
        %v600 = vunpack.c.h.b16 %v366
        %v601 = vunpack.c.l.b16 %v367
        %v602 = vunpack.c.h.b16 %v367
        %v603 = vunpack.c.l.b16 %v368
        %v604 = vunpack.c.h.b16 %v368
        %v605 = vunpack.c.l.b16 %v369
        %v606 = vunpack.c.h.b16 %v369
        %v607 = vunpack.c.l.b16 %v370
        %v608 = vunpack.c.h.b16 %v370
        %v609 = vunpack.c.l.b16 %v371
        %v610 = vunpack.c.h.b16 %v371
        %v611 = vunpack.c.l.b16 %v372
        %v612 = vunpack.c.h.b16 %v372
        %v613 = vunpack.c.l.b16 %v373
        %v614 = vunpack.c.h.b16 %v373
        %v615 = vunpack.c.l.b16 %v374
        %v616 = vunpack.c.h.b16 %v374
        %v617 = vunpack.c.l.b16 %v375
        %v618 = vunpack.c.h.b16 %v375
        %v619 = vunpack.c.l.b16 %v376
        %v620 = vunpack.c.h.b16 %v376
        %v621 = vunpack.c.l.b16 %v377
        %v622 = vunpack.c.h.b16 %v377
        %v623 = vunpack.c.l.b16 %v378
        %v624 = vunpack.c.h.b16 %v378
        %v625 = vunpack.c.l.b16 %v379
        %v626 = vunpack.c.h.b16 %v379
        %v627 = vunpack.c.l.b16 %v380
        %v628 = vunpack.c.h.b16 %v380
        %v629 = vunpack.c.l.b16 %v381
        %v630 = vunpack.c.h.b16 %v381
        %v631 = vunpack.c.l.b16 %v382
        %v632 = vunpack.c.h.b16 %v382
        %v633 = vunpack.c.l.b16 %v383
        %v634 = vunpack.c.h.b16 %v383
        %v635 = vunpack.c.l.b16 %v384
        %v636 = vunpack.c.h.b16 %v384
        %v637 = vunpack.c.l.b16 %v385
        %v638 = vunpack.c.h.b16 %v385
        %v639 = vunpack.c.l.b16 %v386
        %v640 = vunpack.c.h.b16 %v386
        %v641 = vunpack.c.l.b16 %v387
        %v642 = vunpack.c.h.b16 %v387
        %v643 = vunpack.c.l.b16 %v388
        %v644 = vunpack.c.h.b16 %v388
        %v645 = vunpack.c.l.b16 %v389
        %v646 = vunpack.c.h.b16 %v389
        %v647 = vunpack.c.l.b16 %v390
        %v648 = vunpack.c.h.b16 %v390
        %v649 = vunpack.c.l.b16 %v391
        %v650 = vunpack.c.h.b16 %v391
        %v651 = vunpack.c.l.b16 %v392
        %v652 = vunpack.c.h.b16 %v392
        %v653 = vunpack.c.l.b16 %v393
        %v654 = vunpack.c.h.b16 %v393
        %v655 = vunpack.c.l.b16 %v394
        %v656 = vunpack.c.h.b16 %v394
        %v657 = vunpack.c.l.b16 %v395
        %v658 = vunpack.c.h.b16 %v395
        %v659 = vunpack.c.l.b16 %v396
        %v660 = vunpack.c.h.b16 %v396
        %v661 = vunpack.c.l.b16 %v397
        %v662 = vunpack.c.h.b16 %v397
        %v663 = vunpack.c.l.b16 %v398
        %v664 = vunpack.c.h.b16 %v398
        %v665 = vunpack.c.l.b16 %v399
        %v666 = vunpack.c.h.b16 %v399
        %v667 = vunpack.c.l.b16 %v400
        %v668 = vunpack.c.h.b16 %v400
        %v669 = vunpack.c.l.b16 %v401
        %v670 = vunpack.c.h.b16 %v401
        %v671 = vunpack.c.l.b16 %v402
        %v672 = vunpack.c.h.b16 %v402
        %v673 = vunpack.c.l.b16 %v403
        %v674 = vunpack.c.h.b16 %v403
        %v675 = vunpack.c.l.b16 %v404
        %v676 = vunpack.c.h.b16 %v404
        %v677 = vunpack.c.l.b16 %v405
        %v678 = vunpack.c.h.b16 %v405
        %v679 = vunpack.c.l.b16 %v406
        %v680 = vunpack.c.h.b16 %v406
        %v681 = vunpack.c.l.b16 %v407
        %v682 = vunpack.c.h.b16 %v407
        %v683 = vunpack.c.l.b16 %v408
        %v684 = vunpack.c.h.b16 %v408
        %v685 = vunpack.c.l.b16 %v409
        %v686 = vunpack.c.h.b16 %v409
        %v687 = vunpack.c.l.b16 %v410
        %v688 = vunpack.c.h.b16 %v410
        %v689 = vunpack.c.l.b16 %v411
        %v690 = vunpack.c.h.b16 %v411
        %v691 = vunpack.c.l.b16 %v412
        %v692 = vunpack.c.h.b16 %v412
        %v693 = vunpack.c.l.b16 %v413
        %v694 = vunpack.c.h.b16 %v413
        %v695 = vunpack.c.l.b16 %v414
        %v696 = vunpack.c.h.b16 %v414
        %v697 = vunpack.c.l.b16 %v415
        %v698 = vunpack.c.h.b16 %v415
        %v699 = vunpack.c.l.b16 %v416
        %v700 = vunpack.c.h.b16 %v416
        %v701 = vunpack.c.l.b16 %v417
        %v702 = vunpack.c.h.b16 %v417
        %v703 = vunpack.c.l.b16 %v418
        %v704 = vunpack.c.h.b16 %v418
        %v705 = vunpack.c.l.b16 %v419
        %v706 = vunpack.c.h.b16 %v419
        %v707 = vunpack.c.l.b16 %v420
        %v708 = vunpack.c.h.b16 %v420
        %v709 = vunpack.c.l.b16 %v421
        %v710 = vunpack.c.h.b16 %v421
        %v711 = vunpack.c.l.b16 %v422
        %v712 = vunpack.c.h.b16 %v422
        %v713 = vunpack.c.l.b16 %v423
        %v714 = vunpack.c.h.b16 %v423
        %v715 = vunpack.c.l.b16 %v424
        %v716 = vunpack.c.h.b16 %v424
        %v717 = vunpack.c.l.b16 %v425
        %v718 = vunpack.c.h.b16 %v425
        %v719 = vunpack.c.l.b16 %v426
        %v720 = vunpack.c.h.b16 %v426
        %v721 = vunpack.c.l.b16 %v427
        %v722 = vunpack.c.h.b16 %v427
        %v723 = vunpack.c.l.b16 %v428
        %v724 = vunpack.c.h.b16 %v428
        %v725 = vunpack.c.l.b16 %v429
        %v726 = vunpack.c.h.b16 %v429
        %v727 = vunpack.c.l.b16 %v430
        %v728 = vunpack.c.h.b16 %v430
        %v729 = vunpack.c.l.b16 %v431
        %v730 = vunpack.c.h.b16 %v431
        %v731 = vunpack.c.l.b16 %v432
        %v732 = vunpack.c.h.b16 %v432
        %v733 = vunpack.c.l.b16 %v433
        %v734 = vunpack.c.h.b16 %v433
        %v735 = vunpack.c.l.b16 %v434
        %v736 = vunpack.c.h.b16 %v434
        %v737 = vunpack.c.l.b16 %v435
        %v738 = vunpack.c.h.b16 %v435
        %v739 = vunpack.c.l.b16 %v436
        %v740 = vunpack.c.h.b16 %v436
        %v741 = vunpack.c.l.b16 %v437
        %v742 = vunpack.c.h.b16 %v437
        %v743 = vunpack.c.l.b16 %v438
        %v744 = vunpack.c.h.b16 %v438
        %v745 = vunpack.c.l.b16 %v439
        %v746 = vunpack.c.h.b16 %v439
        %v747 = vunpack.c.l.b16 %v440
        %v748 = vunpack.c.h.b16 %v440
        %v749 = vunpack.c.l.b16 %v441
        %v750 = vunpack.c.h.b16 %v441
        %v751 = vunpack.c.l.b16 %v442
        %v752 = vunpack.c.h.b16 %v442
        %v753 = vpack.c.b16 %v565, %v561
        %v754 = vpack.c.b16 %v566, %v562
        %v755 = vpack.c.b16 %v567, %v563
        %v756 = vpack.c.b16 %v568, %v564
        %v757 = vpack.c.b16 %v573, %v569
        %v758 = vpack.c.b16 %v574, %v570
        %v759 = vpack.c.b16 %v575, %v571
        %v760 = vpack.c.b16 %v576, %v572
        %v761 = vpack.c.b16 %v581, %v577
        %v762 = vpack.c.b16 %v582, %v578
        %v763 = vpack.c.b16 %v583, %v579
        %v764 = vpack.c.b16 %v584, %v580
        %v765 = vpack.c.b16 %v589, %v585
        %v766 = vpack.c.b16 %v590, %v586
        %v767 = vpack.c.b16 %v591, %v587
        %v768 = vpack.c.b16 %v592, %v588
        %v769 = vpack.c.b16 %v597, %v593
        %v770 = vpack.c.b16 %v598, %v594
        %v771 = vpack.c.b16 %v599, %v595
        %v772 = vpack.c.b16 %v600, %v596
        %v773 = vpack.c.b16 %v605, %v601
        %v774 = vpack.c.b16 %v606, %v602
        %v775 = vpack.c.b16 %v607, %v603
        %v776 = vpack.c.b16 %v608, %v604
        %v777 = vpack.c.b16 %v613, %v609
        %v778 = vpack.c.b16 %v614, %v610
        %v779 = vpack.c.b16 %v615, %v611
        %v780 = vpack.c.b16 %v616, %v612
        %v781 = vpack.c.b16 %v621, %v617
        %v782 = vpack.c.b16 %v622, %v618
        %v783 = vpack.c.b16 %v623, %v619
        %v784 = vpack.c.b16 %v624, %v620
        %v785 = vpack.c.b16 %v629, %v625
        %v786 = vpack.c.b16 %v630, %v626
        %v787 = vpack.c.b16 %v631, %v627
        %v788 = vpack.c.b16 %v632, %v628
        %v789 = vpack.c.b16 %v637, %v633
        %v790 = vpack.c.b16 %v638, %v634
        %v791 = vpack.c.b16 %v639, %v635
        %v792 = vpack.c.b16 %v640, %v636
        %v793 = vpack.c.b16 %v645, %v641
        %v794 = vpack.c.b16 %v646, %v642
        %v795 = vpack.c.b16 %v647, %v643
        %v796 = vpack.c.b16 %v648, %v644
        %v797 = vpack.c.b16 %v653, %v649
        %v798 = vpack.c.b16 %v654, %v650
        %v799 = vpack.c.b16 %v655, %v651
        %v800 = vpack.c.b16 %v656, %v652
        %v801 = vpack.c.b16 %v661, %v657
        %v802 = vpack.c.b16 %v662, %v658
        %v803 = vpack.c.b16 %v663, %v659
        %v804 = vpack.c.b16 %v664, %v660
        %v805 = vpack.c.b16 %v669, %v665
        %v806 = vpack.c.b16 %v670, %v666
        %v807 = vpack.c.b16 %v671, %v667
        %v808 = vpack.c.b16 %v672, %v668
        %v809 = vpack.c.b16 %v677, %v673
        %v810 = vpack.c.b16 %v678, %v674
        %v811 = vpack.c.b16 %v679, %v675
        %v812 = vpack.c.b16 %v680, %v676
        %v813 = vpack.c.b16 %v685, %v681
        %v814 = vpack.c.b16 %v686, %v682
        %v815 = vpack.c.b16 %v687, %v683
        %v816 = vpack.c.b16 %v688, %v684
        %v817 = vpack.c.b16 %v693, %v689
        %v818 = vpack.c.b16 %v694, %v690
        %v819 = vpack.c.b16 %v695, %v691
        %v820 = vpack.c.b16 %v696, %v692
        %v821 = vpack.c.b16 %v701, %v697
        %v822 = vpack.c.b16 %v702, %v698
        %v823 = vpack.c.b16 %v703, %v699
        %v824 = vpack.c.b16 %v704, %v700
        %v825 = vpack.c.b16 %v709, %v705
        %v826 = vpack.c.b16 %v710, %v706
        %v827 = vpack.c.b16 %v711, %v707
        %v828 = vpack.c.b16 %v712, %v708
        %v829 = vpack.c.b16 %v717, %v713
        %v830 = vpack.c.b16 %v718, %v714
        %v831 = vpack.c.b16 %v719, %v715
        %v832 = vpack.c.b16 %v720, %v716
        %v833 = vpack.c.b16 %v725, %v721
        %v834 = vpack.c.b16 %v726, %v722
        %v835 = vpack.c.b16 %v727, %v723
        %v836 = vpack.c.b16 %v728, %v724
        %v837 = vpack.c.b16 %v733, %v729
        %v838 = vpack.c.b16 %v734, %v730
        %v839 = vpack.c.b16 %v735, %v731
        %v840 = vpack.c.b16 %v736, %v732
        %v841 = vpack.c.b16 %v741, %v737
        %v842 = vpack.c.b16 %v742, %v738
        %v843 = vpack.c.b16 %v743, %v739
        %v844 = vpack.c.b16 %v744, %v740
        %v845 = vpack.c.b16 %v749, %v745
        %v846 = vpack.c.b16 %v750, %v746
        %v847 = vpack.c.b16 %v751, %v747
        %v848 = vpack.c.b16 %v752, %v748
        %945 = vmatprep.subr.bf16.mxu0 %v754
        %946 = vmatpush1.bf16.msra.mxu0 %v753
        %947 = vmatprep.subr.bf16.mxu0 %v758
        %948 = vmatpush1.bf16.msra.mxu0 %v757
        %949 = vmatprep.subr.bf16.mxu0 %v762
        %950 = vmatpush1.bf16.msra.mxu0 %v761
        %951 = vmatprep.subr.bf16.mxu0 %v766
        %952 = vmatpush1.bf16.msra.mxu0 %v765
        %953 = vmatprep.subr.bf16.mxu0 %v770
        %954 = vmatpush1.bf16.msra.mxu0 %v769
        %955 = vmatprep.subr.bf16.mxu0 %v774
        %956 = vmatpush1.bf16.msra.mxu0 %v773
        %957 = vmatprep.subr.bf16.mxu0 %v778
        %958 = vmatpush1.bf16.msra.mxu0 %v777
        %959 = vmatprep.subr.bf16.mxu0 %v782
        %960 = vmatpush1.bf16.msra.mxu0 %v781
        %961 = vmatprep.subr.bf16.mxu0 %v786
        %962 = vmatpush1.bf16.msra.mxu0 %v785
        %963 = vmatprep.subr.bf16.mxu0 %v790
        %964 = vmatpush1.bf16.msra.mxu0 %v789
        %965 = vmatprep.subr.bf16.mxu0 %v794
        %966 = vmatpush1.bf16.msra.mxu0 %v793
        %967 = vmatprep.subr.bf16.mxu0 %v798
        %968 = vmatpush1.bf16.msra.mxu0 %v797
        %969 = vmatprep.subr.bf16.mxu0 %v802
        %970 = vmatpush1.bf16.msra.mxu0 %v801
        %971 = vmatprep.subr.bf16.mxu0 %v806
        %972 = vmatpush1.bf16.msra.mxu0 %v805
        %973 = vmatprep.subr.bf16.mxu0 %v810
        %974 = vmatpush1.bf16.msra.mxu0 %v809
        %975 = vmatprep.subr.bf16.mxu0 %v814
        %976 = vmatpush1.bf16.msra.mxu0 %v813
        %977 = vmatprep.mubr.bf16.mxu0 %v337
        %978 = vmatmul.mubr.bf16.gmra.mrb[0].mxu0 %v320
        %v979 = vpop.f32.mrb[0].mxu0
        %v980 = vadd.f32 %v448, %v979
        %v981 = vpop.f32.mrb[0].mxu0
        %v982 = vadd.f32 %v452, %v981
        %v983 = vpop.f32.mrb[0].mxu0
        %v984 = vadd.f32 %v448, %v983
        %v985 = vpop.f32.mrb[0].mxu0
        %v986 = vadd.f32 %v452, %v985
        %987 = vdwg.mxu0
        %988 = vmatprep.subr.bf16.mxu0 %v818
        %989 = vmatpush1.bf16.msra.mxu0 %v817
        %990 = vmatprep.subr.bf16.mxu0 %v822
        %991 = vmatpush1.bf16.msra.mxu0 %v821
        %992 = vmatprep.subr.bf16.mxu0 %v826
        %993 = vmatpush1.bf16.msra.mxu0 %v825
        %994 = vmatprep.subr.bf16.mxu0 %v830
        %995 = vmatpush1.bf16.msra.mxu0 %v829
        %996 = vmatprep.subr.bf16.mxu0 %v834
        %997 = vmatpush1.bf16.msra.mxu0 %v833
        %998 = vmatprep.subr.bf16.mxu0 %v838
        %999 = vmatpush1.bf16.msra.mxu0 %v837
        %1000 = vmatprep.subr.bf16.mxu0 %v842
        %1001 = vmatpush1.bf16.msra.mxu0 %v841
        %1002 = vmatprep.subr.bf16.mxu0 %v846
        %1003 = vmatpush1.bf16.msra.mxu0 %v845
        %1004 = vmatprep.subr.bf16.mxu0 0
        %1005 = vmatpush1.bf16.msra.mxu0 0
        %1006 = vmatprep.subr.bf16.mxu0 0
        %1007 = vmatpush1.bf16.msra.mxu0 0
        %1008 = vmatprep.subr.bf16.mxu0 0
        %1009 = vmatpush1.bf16.msra.mxu0 0
        %1010 = vmatprep.subr.bf16.mxu0 0
        %1011 = vmatpush1.bf16.msra.mxu0 0
        %1012 = vmatprep.subr.bf16.mxu0 0
        %1013 = vmatpush1.bf16.msra.mxu0 0
        %1014 = vmatprep.subr.bf16.mxu0 0
        %1015 = vmatpush1.bf16.msra.mxu0 0
        %1016 = vmatprep.subr.bf16.mxu0 0
        %1017 = vmatpush1.bf16.msra.mxu0 0
        %1018 = vmatprep.subr.bf16.mxu0 0
        %1019 = vmatpush1.bf16.msra.mxu0 0
        %1020 = vmatprep.mubr.bf16.mxu0 0
        %1021 = vmatmul.mubr.bf16.gmra.mrb[0].mxu0 %v345
        %v1022 = vpop.f32.mrb[0].mxu0
        %v1023 = vadd.f32 %v980, %v1022
        %v1024 = vpop.f32.mrb[0].mxu0
        %v1025 = vadd.f32 %v982, %v1024
        %v1026 = vpop.f32.mrb[0].mxu0
        %v1027 = vadd.f32 %v984, %v1026
        %v1028 = vpop.f32.mrb[0].mxu0
        %v1029 = vadd.f32 %v986, %v1028
        %1030 = vdwg.mxu0
        %1031 = vmatprep.subr.bf16.mxu0 %v756
        %1032 = vmatpush1.bf16.msra.mxu0 %v755
        %1033 = vmatprep.subr.bf16.mxu0 %v760
        %1034 = vmatpush1.bf16.msra.mxu0 %v759
        %1035 = vmatprep.subr.bf16.mxu0 %v764
        %1036 = vmatpush1.bf16.msra.mxu0 %v763
        %1037 = vmatprep.subr.bf16.mxu0 %v768
        %1038 = vmatpush1.bf16.msra.mxu0 %v767
        %1039 = vmatprep.subr.bf16.mxu0 %v772
        %1040 = vmatpush1.bf16.msra.mxu0 %v771
        %1041 = vmatprep.subr.bf16.mxu0 %v776
        %1042 = vmatpush1.bf16.msra.mxu0 %v775
        %1043 = vmatprep.subr.bf16.mxu0 %v780
        %1044 = vmatpush1.bf16.msra.mxu0 %v779
        %1045 = vmatprep.subr.bf16.mxu0 %v784
        %1046 = vmatpush1.bf16.msra.mxu0 %v783
        %1047 = vmatprep.subr.bf16.mxu0 %v788
        %1048 = vmatpush1.bf16.msra.mxu0 %v787
        %1049 = vmatprep.subr.bf16.mxu0 %v792
        %1050 = vmatpush1.bf16.msra.mxu0 %v791
        %1051 = vmatprep.subr.bf16.mxu0 %v796
        %1052 = vmatpush1.bf16.msra.mxu0 %v795
        %1053 = vmatprep.subr.bf16.mxu0 %v800
        %1054 = vmatpush1.bf16.msra.mxu0 %v799
        %1055 = vmatprep.subr.bf16.mxu0 %v804
        %1056 = vmatpush1.bf16.msra.mxu0 %v803
        %1057 = vmatprep.subr.bf16.mxu0 %v808
        %1058 = vmatpush1.bf16.msra.mxu0 %v807
        %1059 = vmatprep.subr.bf16.mxu0 %v812
        %1060 = vmatpush1.bf16.msra.mxu0 %v811
        %1061 = vmatprep.subr.bf16.mxu0 %v816
        %1062 = vmatpush1.bf16.msra.mxu0 %v815
        %1063 = vmatprep.mubr.bf16.mxu0 %v337
        %1064 = vmatmul.mubr.bf16.gmra.mrb[0].mxu0 %v320
        %v1065 = vpop.f32.mrb[0].mxu0
        %v1066 = vadd.f32 %v456, %v1065
        %v1067 = vpop.f32.mrb[0].mxu0
        %v1068 = vadd.f32 %v460, %v1067
        %v1069 = vpop.f32.mrb[0].mxu0
        %v1070 = vadd.f32 %v456, %v1069
        %v1071 = vpop.f32.mrb[0].mxu0
        %v1072 = vadd.f32 %v460, %v1071
        %1073 = vdwg.mxu0
        %1074 = vmatprep.subr.bf16.mxu0 %v820
        %1075 = vmatpush1.bf16.msra.mxu0 %v819
        %1076 = vmatprep.subr.bf16.mxu0 %v824
        %1077 = vmatpush1.bf16.msra.mxu0 %v823
        %1078 = vmatprep.subr.bf16.mxu0 %v828
        %1079 = vmatpush1.bf16.msra.mxu0 %v827
        %1080 = vmatprep.subr.bf16.mxu0 %v832
        %1081 = vmatpush1.bf16.msra.mxu0 %v831
        %1082 = vmatprep.subr.bf16.mxu0 %v836
        %1083 = vmatpush1.bf16.msra.mxu0 %v835
        %1084 = vmatprep.subr.bf16.mxu0 %v840
        %1085 = vmatpush1.bf16.msra.mxu0 %v839
        %1086 = vmatprep.subr.bf16.mxu0 %v844
        %1087 = vmatpush1.bf16.msra.mxu0 %v843
        %1088 = vmatprep.subr.bf16.mxu0 %v848
        %1089 = vmatpush1.bf16.msra.mxu0 %v847
        %1090 = vmatprep.subr.bf16.mxu0 0
        %1091 = vmatpush1.bf16.msra.mxu0 0
        %1092 = vmatprep.subr.bf16.mxu0 0
        %1093 = vmatpush1.bf16.msra.mxu0 0
        %1094 = vmatprep.subr.bf16.mxu0 0
        %1095 = vmatpush1.bf16.msra.mxu0 0
        %1096 = vmatprep.subr.bf16.mxu0 0
        %1097 = vmatpush1.bf16.msra.mxu0 0
        %1098 = vmatprep.subr.bf16.mxu0 0
        %1099 = vmatpush1.bf16.msra.mxu0 0
        %1100 = vmatprep.subr.bf16.mxu0 0
        %1101 = vmatpush1.bf16.msra.mxu0 0
        %1102 = vmatprep.subr.bf16.mxu0 0
        %1103 = vmatpush1.bf16.msra.mxu0 0
        %1104 = vmatprep.subr.bf16.mxu0 0
        %1105 = vmatpush1.bf16.msra.mxu0 0
        %1106 = vmatprep.mubr.bf16.mxu0 0
        %1107 = vmatmul.mubr.bf16.gmra.mrb[0].mxu0 %v345
        %v1108 = vpop.f32.mrb[0].mxu0
        %v1109 = vadd.f32 %v1066, %v1108
        %v1110 = vpop.f32.mrb[0].mxu0
        %v1111 = vadd.f32 %v1068, %v1110
        %v1112 = vpop.f32.mrb[0].mxu0
        %v1113 = vadd.f32 %v1070, %v1112
        %v1114 = vpop.f32.mrb[0].mxu0
        %v1115 = vadd.f32 %v1072, %v1114
        %1116 = vdwg.mxu0
        %v1117 = vmax.f32 %v1023, 0.0
        %v1118 = vmax.f32 %v1025, 0.0
        %v1119 = vmax.f32 %v1109, 0.0
        %v1120 = vmax.f32 %v1111, 0.0
        %v1121 = vmax.f32 %v1027, 0.0
        %v1122 = vmax.f32 %v1029, 0.0
        %v1123 = vmax.f32 %v1113, 0.0
        %v1124 = vmax.f32 %v1115, 0.0
        %v1125 = vld [vmem:[#allocation2] sm:$0xf]
        %v1126 = vadd.f32 %v1117, %v1121
        %v1127 = vrot.slane %v1126, 4
        %v1128 = vadd.f32 %v1126, %v1127
        %v1129 = vrot.slane %v1128, 2
        %v1130 = vadd.f32 %v1128, %v1129
        %v1131 = vrot.slane %v1130, 1
        %v1132 = vadd.f32 %v1130, %v1131
        %v1133 = vadd.f32 %v1118, %v1122
        %v1134 = vrot.slane %v1133, 4
        %v1135 = vadd.f32 %v1133, %v1134
        %v1136 = vrot.slane %v1135, 2
        %v1137 = vadd.f32 %v1135, %v1136
        %v1138 = vrot.slane %v1137, 1
        %v1139 = vadd.f32 %v1137, %v1138
        %v1140 = vadd.f32 %v1119, %v1123
        %v1141 = vrot.slane %v1140, 4
        %v1142 = vadd.f32 %v1140, %v1141
        %v1143 = vrot.slane %v1142, 2
        %v1144 = vadd.f32 %v1142, %v1143
        %v1145 = vrot.slane %v1144, 1
        %v1146 = vadd.f32 %v1144, %v1145
        %v1147 = vadd.f32 %v1120, %v1124
        %v1148 = vrot.slane %v1147, 4
        %v1149 = vadd.f32 %v1147, %v1148
        %v1150 = vrot.slane %v1149, 2
        %v1151 = vadd.f32 %v1149, %v1150
        %v1152 = vrot.slane %v1151, 1
        %v1153 = vadd.f32 %v1151, %v1152
        %v1158 = vcombine.low %v1132, %v1139
        %v1159 = vcombine.low %v1146, %v1153
        %v1161 = vunpack.c.l.s4 1966171168
        %v1162 = vunpack.c.0.s8 %v1161
        %v1163 = vlaneseq
        %v1164 = vshrl.u32 %v1163, 7
        %v1165 = vsub.s32 %v1162, %v1164
        %v1166 = vrot.slane %v1158, %v1165
        %v1168 = vunpack.c.l.s4 1966171168
        %v1169 = vunpack.c.0.s8 %v1168
        %v1170 = vlaneseq
        %v1171 = vshrl.u32 %v1170, 7
        %v1172 = vsub.s32 %v1169, %v1171
        %v1173 = vrot.slane %v1159, %v1172
        %v1174 = vcombine.low %v1166, %v1173
        %v1176 = vunpack.c.l.s4 1966171168
        %v1177 = vunpack.c.0.s8 %v1176
        %v1178 = vlaneseq
        %v1179 = vshrl.u32 %v1178, 7
        %v1180 = vsub.s32 %v1177, %v1179
        %v1181 = vrot.slane %v1174, %v1180
        %v1183 = vadd.f32 %v1125, %v1181
        %v1184 = vlaneseq
        %vm1185 = vcmp.ge.s32.totalorder %v1184, 0
        %vm1186 = vcmp.lt.s32.totalorder %v1184, 512
        %vm1187 = vmand %vm1185, %vm1186
        %1188 = vst.msk [vmem:[#allocation2] sm:$0xf] %vm1187, %v1183
        // Predicated region
        $region53: #{_lambda_.1} parent=47 // pred_check
          %p1189 = pneg %p303
        $region54: #{_lambda_.1} parent=47 // pred_check_branch
          %1191 = sbr.rel (%p1189) target = $region56
        $region55: #{_lambda_.1} parent=47 // pred_region
          %v1192 = vld [vmem:[#allocation2] sm:$0xf]
          %v1194 = vlaneseq
          %v1195 = vshrl.u32 %v1194, 7
          %v1196 = vsub.s32 0, %v1195
          %v1197 = vrot.slane %v1192, %v1196
          %v1198 = vlaneseq
          %v1199 = vshrl.u32 %v1198, 7
          %v1200 = vsub.s32 1, %v1199
          %v1201 = vrot.slane %v1192, %v1200
          %v1202 = vlaneseq
          %v1203 = vshrl.u32 %v1202, 7
          %v1204 = vsub.s32 2, %v1203
          %v1205 = vrot.slane %v1192, %v1204
          %v1206 = vlaneseq
          %v1207 = vshrl.u32 %v1206, 7
          %v1208 = vsub.s32 3, %v1207
          %v1209 = vrot.slane %v1192, %v1208
          %v1214 = vpack.c.bf16 %v1197, %v1197
          %v1215 = vpack.c.bf16 %v1201, %v1201
          %v1216 = vpack.c.bf16 %v1205, %v1205
          %v1217 = vpack.c.bf16 %v1209, %v1209
          %v1218 = vld [vmem:[%s3] sm:$0xf]
          %v1219 = vld [vmem:[%s3 + $0x4] sm:$0xf]
          %v1220 = vld [vmem:[%s3 + $0x8] sm:$0xf]
          %v1221 = vld [vmem:[%s3 + $0xc] sm:$0xf]
          %v1222 = vld [vmem:[%s3 + $0x10] sm:$0xf]
          %v1223 = vld [vmem:[%s3 + $0x14] sm:$0xf]
          %v1224 = vld [vmem:[%s3 + $0x18] sm:$0xf]
          %v1225 = vld [vmem:[%s3 + $0x1c] sm:$0xf]
          %v1226 = vld [vmem:[%s3 + $0x20] sm:$0xf]
          %v1227 = vld [vmem:[%s3 + $0x24] sm:$0xf]
          %v1228 = vld [vmem:[%s3 + $0x28] sm:$0xf]
          %v1229 = vld [vmem:[%s3 + $0x2c] sm:$0xf]
          %v1230 = vld [vmem:[%s3 + $0x30] sm:$0xf]
          %v1231 = vld [vmem:[%s3 + $0x34] sm:$0xf]
          %v1232 = vld [vmem:[%s3 + $0x38] sm:$0xf]
          %v1233 = vld [vmem:[%s3 + $0x3c] sm:$0xf]
          %v1234 = vld [vmem:[%s3 + $0x40] sm:$0xf]
          %v1235 = vld [vmem:[%s3 + $0x44] sm:$0xf]
          %v1236 = vld [vmem:[%s3 + $0x48] sm:$0xf]
          %v1237 = vld [vmem:[%s3 + $0x4c] sm:$0xf]
          %v1238 = vld [vmem:[%s3 + $0x50] sm:$0xf]
          %v1239 = vld [vmem:[%s3 + $0x54] sm:$0xf]
          %v1240 = vld [vmem:[%s3 + $0x58] sm:$0xf]
          %v1241 = vld [vmem:[%s3 + $0x5c] sm:$0xf]
          %v1242 = vld [vmem:[%s3 + $0x60] sm:$0xf]
          %v1243 = vld [vmem:[%s3 + $0x64] sm:$0xf]
          %v1244 = vld [vmem:[%s3 + $0x68] sm:$0xf]
          %v1245 = vld [vmem:[%s3 + $0x6c] sm:$0xf]
          %v1246 = vld [vmem:[%s3 + $0x70] sm:$0xf]
          %v1247 = vld [vmem:[%s3 + $0x74] sm:$0xf]
          %v1248 = vld [vmem:[%s3 + $0x78] sm:$0xf]
          %v1249 = vld [vmem:[%s3 + $0x7c] sm:$0xf]
          %v1250 = vld [vmem:[%s3 + $0x80] sm:$0xf]
          %v1251 = vld [vmem:[%s3 + $0x84] sm:$0xf]
          %v1252 = vld [vmem:[%s3 + $0x88] sm:$0xf]
          %v1253 = vld [vmem:[%s3 + $0x8c] sm:$0xf]
          %v1254 = vld [vmem:[%s3 + $0x90] sm:$0xf]
          %v1255 = vld [vmem:[%s3 + $0x94] sm:$0xf]
          %v1256 = vld [vmem:[%s3 + $0x98] sm:$0xf]
          %v1257 = vld [vmem:[%s3 + $0x9c] sm:$0xf]
          %v1258 = vld [vmem:[%s3 + $0xa0] sm:$0xf]
          %v1259 = vld [vmem:[%s3 + $0xa4] sm:$0xf]
          %v1260 = vld [vmem:[%s3 + $0xa8] sm:$0xf]
          %v1261 = vld [vmem:[%s3 + $0xac] sm:$0xf]
          %v1262 = vld [vmem:[%s3 + $0xb0] sm:$0xf]
          %v1263 = vld [vmem:[%s3 + $0xb4] sm:$0xf]
          %v1264 = vld [vmem:[%s3 + $0xb8] sm:$0xf]
          %v1265 = vld [vmem:[%s3 + $0xbc] sm:$0xf]
          %v1266 = vld [vmem:[%s3 + $0xc0] sm:$0xf]
          %v1267 = vld [vmem:[%s3 + $0xc4] sm:$0xf]
          %v1268 = vld [vmem:[%s3 + $0xc8] sm:$0xf]
          %v1269 = vld [vmem:[%s3 + $0xcc] sm:$0xf]
          %v1270 = vld [vmem:[%s3 + $0xd0] sm:$0xf]
          %v1271 = vld [vmem:[%s3 + $0xd4] sm:$0xf]
          %v1272 = vld [vmem:[%s3 + $0xd8] sm:$0xf]
          %v1273 = vld [vmem:[%s3 + $0xdc] sm:$0xf]
          %v1274 = vld [vmem:[%s3 + $0xe0] sm:$0xf]
          %v1275 = vld [vmem:[%s3 + $0xe4] sm:$0xf]
          %v1276 = vld [vmem:[%s3 + $0xe8] sm:$0xf]
          %v1277 = vld [vmem:[%s3 + $0xec] sm:$0xf]
          %v1278 = vld [vmem:[%s3 + $0xf0] sm:$0xf]
          %v1279 = vld [vmem:[%s3 + $0xf4] sm:$0xf]
          %v1280 = vld [vmem:[%s3 + $0xf8] sm:$0xf]
          %v1281 = vld [vmem:[%s3 + $0xfc] sm:$0xf]
          %v1282 = vld [vmem:[%s4] sm:$0x1]
          %v1347 = vunpack.c.l.b16 %v1218
          %v1348 = vunpack.c.l.b16 %v1219
          %v1349 = vunpack.c.l.b16 %v1220
          %v1350 = vunpack.c.l.b16 %v1221
          %v1351 = vunpack.c.l.b16 %v1222
          %v1352 = vunpack.c.l.b16 %v1223
          %v1353 = vunpack.c.l.b16 %v1224
          %v1354 = vunpack.c.l.b16 %v1225
          %v1355 = vunpack.c.l.b16 %v1226
          %v1356 = vunpack.c.l.b16 %v1227
          %v1357 = vunpack.c.l.b16 %v1228
          %v1358 = vunpack.c.l.b16 %v1229
          %v1359 = vunpack.c.l.b16 %v1230
          %v1360 = vunpack.c.l.b16 %v1231
          %v1361 = vunpack.c.l.b16 %v1232
          %v1362 = vunpack.c.l.b16 %v1233
          %v1363 = vunpack.c.l.b16 %v1234
          %v1364 = vunpack.c.l.b16 %v1235
          %v1365 = vunpack.c.l.b16 %v1236
          %v1366 = vunpack.c.l.b16 %v1237
          %v1367 = vunpack.c.l.b16 %v1238
          %v1368 = vunpack.c.l.b16 %v1239
          %v1369 = vunpack.c.l.b16 %v1240
          %v1370 = vunpack.c.l.b16 %v1241
          %v1371 = vunpack.c.l.b16 %v1242
          %v1372 = vunpack.c.l.b16 %v1243
          %v1373 = vunpack.c.l.b16 %v1244
          %v1374 = vunpack.c.l.b16 %v1245
          %v1375 = vunpack.c.l.b16 %v1246
          %v1376 = vunpack.c.l.b16 %v1247
          %v1377 = vunpack.c.l.b16 %v1248
          %v1378 = vunpack.c.l.b16 %v1249
          %v1379 = vunpack.c.l.b16 %v1250
          %v1380 = vunpack.c.l.b16 %v1251
          %v1381 = vunpack.c.l.b16 %v1252
          %v1382 = vunpack.c.l.b16 %v1253
          %v1383 = vunpack.c.l.b16 %v1254
          %v1384 = vunpack.c.l.b16 %v1255
          %v1385 = vunpack.c.l.b16 %v1256
          %v1386 = vunpack.c.l.b16 %v1257
          %v1387 = vunpack.c.l.b16 %v1258
          %v1388 = vunpack.c.l.b16 %v1259
          %v1389 = vunpack.c.l.b16 %v1260
          %v1390 = vunpack.c.l.b16 %v1261
          %v1391 = vunpack.c.l.b16 %v1262
          %v1392 = vunpack.c.l.b16 %v1263
          %v1393 = vunpack.c.l.b16 %v1264
          %v1394 = vunpack.c.l.b16 %v1265
          %v1395 = vunpack.c.l.b16 %v1266
          %v1396 = vunpack.c.l.b16 %v1267
          %v1397 = vunpack.c.l.b16 %v1268
          %v1398 = vunpack.c.l.b16 %v1269
          %v1399 = vunpack.c.l.b16 %v1270
          %v1400 = vunpack.c.l.b16 %v1271
          %v1401 = vunpack.c.l.b16 %v1272
          %v1402 = vunpack.c.l.b16 %v1273
          %v1403 = vunpack.c.l.b16 %v1274
          %v1404 = vunpack.c.l.b16 %v1275
          %v1405 = vunpack.c.l.b16 %v1276
          %v1406 = vunpack.c.l.b16 %v1277
          %v1407 = vunpack.c.l.b16 %v1278
          %v1408 = vunpack.c.l.b16 %v1279
          %v1409 = vunpack.c.l.b16 %v1280
          %v1410 = vunpack.c.l.b16 %v1281
          %v1411 = vpack.c.b16 %v1348, %v1347
          %v1412 = vpack.c.b16 %v1350, %v1349
          %v1413 = vpack.c.b16 %v1352, %v1351
          %v1414 = vpack.c.b16 %v1354, %v1353
          %v1415 = vpack.c.b16 %v1356, %v1355
          %v1416 = vpack.c.b16 %v1358, %v1357
          %v1417 = vpack.c.b16 %v1360, %v1359
          %v1418 = vpack.c.b16 %v1362, %v1361
          %v1419 = vpack.c.b16 %v1364, %v1363
          %v1420 = vpack.c.b16 %v1366, %v1365
          %v1421 = vpack.c.b16 %v1368, %v1367
          %v1422 = vpack.c.b16 %v1370, %v1369
          %v1423 = vpack.c.b16 %v1372, %v1371
          %v1424 = vpack.c.b16 %v1374, %v1373
          %v1425 = vpack.c.b16 %v1376, %v1375
          %v1426 = vpack.c.b16 %v1378, %v1377
          %v1427 = vpack.c.b16 %v1380, %v1379
          %v1428 = vpack.c.b16 %v1382, %v1381
          %v1429 = vpack.c.b16 %v1384, %v1383
          %v1430 = vpack.c.b16 %v1386, %v1385
          %v1431 = vpack.c.b16 %v1388, %v1387
          %v1432 = vpack.c.b16 %v1390, %v1389
          %v1433 = vpack.c.b16 %v1392, %v1391
          %v1434 = vpack.c.b16 %v1394, %v1393
          %v1435 = vpack.c.b16 %v1396, %v1395
          %v1436 = vpack.c.b16 %v1398, %v1397
          %v1437 = vpack.c.b16 %v1400, %v1399
          %v1438 = vpack.c.b16 %v1402, %v1401
          %v1439 = vpack.c.b16 %v1404, %v1403
          %v1440 = vpack.c.b16 %v1406, %v1405
          %v1441 = vpack.c.b16 %v1408, %v1407
          %v1442 = vpack.c.b16 %v1410, %v1409
          %1475 = vmatprep.subr.bf16.mxu0 0
          %1476 = vmatpush1.bf16.msra.mxu0 %v1411
          %1477 = vmatprep.subr.bf16.mxu0 0
          %1478 = vmatpush1.bf16.msra.mxu0 %v1412
          %1479 = vmatprep.subr.bf16.mxu0 0
          %1480 = vmatpush1.bf16.msra.mxu0 %v1413
          %1481 = vmatprep.subr.bf16.mxu0 0
          %1482 = vmatpush1.bf16.msra.mxu0 %v1414
          %1483 = vmatprep.subr.bf16.mxu0 0
          %1484 = vmatpush1.bf16.msra.mxu0 %v1415
          %1485 = vmatprep.subr.bf16.mxu0 0
          %1486 = vmatpush1.bf16.msra.mxu0 %v1416
          %1487 = vmatprep.subr.bf16.mxu0 0
          %1488 = vmatpush1.bf16.msra.mxu0 %v1417
          %1489 = vmatprep.subr.bf16.mxu0 0
          %1490 = vmatpush1.bf16.msra.mxu0 %v1418
          %1491 = vmatprep.subr.bf16.mxu0 0
          %1492 = vmatpush1.bf16.msra.mxu0 %v1419
          %1493 = vmatprep.subr.bf16.mxu0 0
          %1494 = vmatpush1.bf16.msra.mxu0 %v1420
          %1495 = vmatprep.subr.bf16.mxu0 0
          %1496 = vmatpush1.bf16.msra.mxu0 %v1421
          %1497 = vmatprep.subr.bf16.mxu0 0
          %1498 = vmatpush1.bf16.msra.mxu0 %v1422
          %1499 = vmatprep.subr.bf16.mxu0 0
          %1500 = vmatpush1.bf16.msra.mxu0 %v1423
          %1501 = vmatprep.subr.bf16.mxu0 0
          %1502 = vmatpush1.bf16.msra.mxu0 %v1424
          %1503 = vmatprep.subr.bf16.mxu0 0
          %1504 = vmatpush1.bf16.msra.mxu0 %v1425
          %1505 = vmatprep.subr.bf16.mxu0 0
          %1506 = vmatpush1.bf16.msra.mxu0 %v1426
          %1507 = vmatprep.mubr.bf16.mxu0 %v1215
          %1508 = vmatmul.mubr.bf16.gmra.mrb[0].mxu0 %v1214
          %v1509 = vpop.f32.mrb[0].mxu0
          %v1510 = vadd.f32 %v1282, %v1509
          %v1511 = vpop.f32.mrb[0].mxu0
          %v1512 = vpop.f32.mrb[0].mxu0
          %v1513 = vpop.f32.mrb[0].mxu0
          %1514 = vdwg.mxu0
          %1515 = vmatprep.subr.bf16.mxu0 0
          %1516 = vmatpush1.bf16.msra.mxu0 %v1427
          %1517 = vmatprep.subr.bf16.mxu0 0
          %1518 = vmatpush1.bf16.msra.mxu0 %v1428
          %1519 = vmatprep.subr.bf16.mxu0 0
          %1520 = vmatpush1.bf16.msra.mxu0 %v1429
          %1521 = vmatprep.subr.bf16.mxu0 0
          %1522 = vmatpush1.bf16.msra.mxu0 %v1430
          %1523 = vmatprep.subr.bf16.mxu0 0
          %1524 = vmatpush1.bf16.msra.mxu0 %v1431
          %1525 = vmatprep.subr.bf16.mxu0 0
          %1526 = vmatpush1.bf16.msra.mxu0 %v1432
          %1527 = vmatprep.subr.bf16.mxu0 0
          %1528 = vmatpush1.bf16.msra.mxu0 %v1433
          %1529 = vmatprep.subr.bf16.mxu0 0
          %1530 = vmatpush1.bf16.msra.mxu0 %v1434
          %1531 = vmatprep.subr.bf16.mxu0 0
          %1532 = vmatpush1.bf16.msra.mxu0 %v1435
          %1533 = vmatprep.subr.bf16.mxu0 0
          %1534 = vmatpush1.bf16.msra.mxu0 %v1436
          %1535 = vmatprep.subr.bf16.mxu0 0
          %1536 = vmatpush1.bf16.msra.mxu0 %v1437
          %1537 = vmatprep.subr.bf16.mxu0 0
          %1538 = vmatpush1.bf16.msra.mxu0 %v1438
          %1539 = vmatprep.subr.bf16.mxu0 0
          %1540 = vmatpush1.bf16.msra.mxu0 %v1439
          %1541 = vmatprep.subr.bf16.mxu0 0
          %1542 = vmatpush1.bf16.msra.mxu0 %v1440
          %1543 = vmatprep.subr.bf16.mxu0 0
          %1544 = vmatpush1.bf16.msra.mxu0 %v1441
          %1545 = vmatprep.subr.bf16.mxu0 0
          %1546 = vmatpush1.bf16.msra.mxu0 %v1442
          %1547 = vmatprep.mubr.bf16.mxu0 %v1217
          %1548 = vmatmul.mubr.bf16.gmra.mrb[0].mxu0 %v1216
          %v1549 = vpop.f32.mrb[0].mxu0
          %v1550 = vadd.f32 %v1510, %v1549
          %v1551 = vpop.f32.mrb[0].mxu0
          %v1552 = vpop.f32.mrb[0].mxu0
          %v1553 = vpop.f32.mrb[0].mxu0
          %1554 = vdwg.mxu0
          %v1555 = vmax.f32 %v1550, 0.0
          %v1556 = vpack.c.bf16 %v1555, %v1555
          %v1557 = vld [vmem:[%s5] sm:$0xf]
          %v1558 = vld [vmem:[%s5 + $0x4] sm:$0xf]
          %v1559 = vld [vmem:[%s5 + $0x8] sm:$0xf]
          %v1560 = vld [vmem:[%s5 + $0xc] sm:$0xf]
          %v1561 = vld [vmem:[%s5 + $0x10] sm:$0xf]
          %v1562 = vld [vmem:[%s5 + $0x14] sm:$0xf]
          %v1563 = vld [vmem:[%s5 + $0x18] sm:$0xf]
          %v1564 = vld [vmem:[%s5 + $0x1c] sm:$0xf]
          %v1565 = vld [vmem:[%s5 + $0x20] sm:$0xf]
          %v1566 = vld [vmem:[%s5 + $0x24] sm:$0xf]
          %v1567 = vld [vmem:[%s5 + $0x28] sm:$0xf]
          %v1568 = vld [vmem:[%s5 + $0x2c] sm:$0xf]
          %v1569 = vld [vmem:[%s5 + $0x30] sm:$0xf]
          %v1570 = vld [vmem:[%s5 + $0x34] sm:$0xf]
          %v1571 = vld [vmem:[%s5 + $0x38] sm:$0xf]
          %v1572 = vld [vmem:[%s5 + $0x3c] sm:$0xf]
          %v1573 = vld [vmem:[%s6] sm:$0x1]
          %v1590 = vunpack.c.l.b16 %v1557
          %v1591 = vunpack.c.l.b16 %v1558
          %v1592 = vunpack.c.l.b16 %v1559
          %v1593 = vunpack.c.l.b16 %v1560
          %v1594 = vunpack.c.l.b16 %v1561
          %v1595 = vunpack.c.l.b16 %v1562
          %v1596 = vunpack.c.l.b16 %v1563
          %v1597 = vunpack.c.l.b16 %v1564
          %v1598 = vunpack.c.l.b16 %v1565
          %v1599 = vunpack.c.l.b16 %v1566
          %v1600 = vunpack.c.l.b16 %v1567
          %v1601 = vunpack.c.l.b16 %v1568
          %v1602 = vunpack.c.l.b16 %v1569
          %v1603 = vunpack.c.l.b16 %v1570
          %v1604 = vunpack.c.l.b16 %v1571
          %v1605 = vunpack.c.l.b16 %v1572
          %v1606 = vpack.c.b16 %v1591, %v1590
          %v1607 = vpack.c.b16 %v1593, %v1592
          %v1608 = vpack.c.b16 %v1595, %v1594
          %v1609 = vpack.c.b16 %v1597, %v1596
          %v1610 = vpack.c.b16 %v1599, %v1598
          %v1611 = vpack.c.b16 %v1601, %v1600
          %v1612 = vpack.c.b16 %v1603, %v1602
          %v1613 = vpack.c.b16 %v1605, %v1604
          %1622 = vmatprep.subr.bf16.mxu0 0
          %1623 = vmatpush1.bf16.msra.mxu0 %v1606
          %1624 = vmatprep.subr.bf16.mxu0 0
          %1625 = vmatpush1.bf16.msra.mxu0 %v1607
          %1626 = vmatprep.subr.bf16.mxu0 0
          %1627 = vmatpush1.bf16.msra.mxu0 %v1608
          %1628 = vmatprep.subr.bf16.mxu0 0
          %1629 = vmatpush1.bf16.msra.mxu0 %v1609
          %1630 = vmatprep.subr.bf16.mxu0 0
          %1631 = vmatpush1.bf16.msra.mxu0 %v1610
          %1632 = vmatprep.subr.bf16.mxu0 0
          %1633 = vmatpush1.bf16.msra.mxu0 %v1611
          %1634 = vmatprep.subr.bf16.mxu0 0
          %1635 = vmatpush1.bf16.msra.mxu0 %v1612
          %1636 = vmatprep.subr.bf16.mxu0 0
          %1637 = vmatpush1.bf16.msra.mxu0 %v1613
          %1638 = vmatprep.subr.bf16.mxu0 0
          %1639 = vmatpush1.bf16.msra.mxu0 0
          %1640 = vmatprep.subr.bf16.mxu0 0
          %1641 = vmatpush1.bf16.msra.mxu0 0
          %1642 = vmatprep.subr.bf16.mxu0 0
          %1643 = vmatpush1.bf16.msra.mxu0 0
          %1644 = vmatprep.subr.bf16.mxu0 0
          %1645 = vmatpush1.bf16.msra.mxu0 0
          %1646 = vmatprep.subr.bf16.mxu0 0
          %1647 = vmatpush1.bf16.msra.mxu0 0
          %1648 = vmatprep.subr.bf16.mxu0 0
          %1649 = vmatpush1.bf16.msra.mxu0 0
          %1650 = vmatprep.subr.bf16.mxu0 0
          %1651 = vmatpush1.bf16.msra.mxu0 0
          %1652 = vmatprep.subr.bf16.mxu0 0
          %1653 = vmatpush1.bf16.msra.mxu0 0
          %1654 = vmatprep.mubr.bf16.mxu0 0
          %1655 = vmatmul.mubr.bf16.gmra.mrb[0].mxu0 %v1556
          %v1656 = vpop.f32.mrb[0].mxu0
          %v1657 = vadd.f32 %v1573, %v1656
          %v1658 = vpop.f32.mrb[0].mxu0
          %v1659 = vpop.f32.mrb[0].mxu0
          %v1660 = vpop.f32.mrb[0].mxu0
          %1661 = vdwg.mxu0
          %1662 = vst [vmem:[%s292] sm:$0x1] %v1657
        $region56: #{_lambda_.1} parent=47 // pred_fallthru
          _
        %s1663 = sand.u32 %s195, 1
        %s1664 = scalar_lea.sflag [#allocation4], %s1663
        %s1665 = sand.u32 %s195, 1
        %s1666 = scalar_lea.vmem [#allocation3], %s1665
        // Predicated region
        $region57: #{_lambda_.1} parent=47 // pred_check
          %p1667 = pneg %p205
        $region58: #{_lambda_.1} parent=47 // pred_check_branch
          %1669 = sbr.rel (%p1667) target = $region60
        $region59: #{_lambda_.1} parent=47 // pred_region
          %s1671 = ssub.s32 16, 16
          %1672 = vsyncadd %s1664, %s1671
          %s1673 = smul.addr %s25, 16
          %s1674 = scalar_lea.hbm %s7, %s1673
          %s1676 = sshll.u32 %s1666, 4
          %s1677 = int_to_ptr.vmem [resolvable:$true] %s1676
          %1679 = dma.vmem_to_hbm [thread:$0]  %s1677, 16, %s1674, %s1664
        $region60: #{_lambda_.1} parent=47 // pred_fallthru
          _
      $region48: #{_lambda_.1} parent=5 // pred_fallthru
        _
      %p1680 = scmp.le.s32.totalorder 2, %s16
      // Predicated region
      $region61: #{_lambda_.1} parent=5 // pred_check
        %p1681 = pneg %p1680
      $region62: #{_lambda_.1} parent=5 // pred_check_branch
        %1683 = sbr.rel (%p1681) target = $region64
      $region63: #{_lambda_.1} parent=5 // pred_region
        %s1684 = ssub.s32 %s16, 2
        // Predicated region
        $region65: #{_lambda_.1} parent=63 // pred_check
          %p1685 = pneg %p211
        $region66: #{_lambda_.1} parent=63 // pred_check_branch
          %1687 = sbr.rel (%p1685) target = $region68
        $region67: #{_lambda_.1} parent=63 // pred_region
          %s1688 = sand.u32 %s196, 1
          %s1689 = scalar_lea.sflag [#allocation4], %s1688
          %s1690 = sand.u32 %s196, 1
          %s1691 = scalar_lea.vmem [#allocation3], %s1690
          %1692 = dma.done %s1689, 16
        $region68: #{_lambda_.1} parent=63 // pred_fallthru
          _
      $region64: #{_lambda_.1} parent=5 // pred_fallthru
        _
    $region6: #{_lambda_.1} parent=1 // loop_footer
      %s20 = sadd.s32 1, %s16
    $region7: #{_lambda_.1} parent=1 // loop_footer_branch
      %15 = sbr.rel target = $region3
    $region8: #{_lambda_.1} parent=1 // loop_exit
      _
    %1693 = vsyncpa [#allocation4], 1
    %s1694 = scalar_lea.sflag [#allocation4], 1
    %1695 = vsyncpa %s1694, 1

</llo_original>
